<compile_context>
chip_gen: v5e
topology: v5e:2x2
jax: 0.10.0
libtpu: 0.0.40
codegen_flags: <defaults>
</compile_context>

<pallas_src>
import jax
import jax.numpy as jnp
import numpy as np
from jax.experimental import pallas as pl
from jax.experimental.pallas import tpu as pltpu


def _down_kernel(x_ref, pm_ref, mask_ref, w1_ref, b1_ref, w2_ref, b2_ref,
                 o_ref, pad1_ref, pad2_ref):
    # x_ref   : (B, Cin*Hp, 2W)    input dtype  (row-pool phases on lanes)
    # pm_ref  : (W, S)             bf16  column-pool matrix, S = Wp + 2
    # mask_ref: (1, Ntot)          f32   1.0 on real output pixels, 0.0 on junk lanes
    # w*_ref  : (9, Co, Ci)        bf16  per-tap weights with conv bias + BN folded in
    # b*_ref  : (Co, 1)            f32   folded bias
    # o_ref   : (1, Cout, Ntot)    f32   lane-dense output (junk stripped in wrapper)
    # pad*_ref: (C, Lpad)          bf16  flat zero-padded activation, row stride S,
    #                                    per-image stride P = (Hp+2)*S
    Cin = pad1_ref.shape[0]
    Cmid = pad2_ref.shape[0]
    B = x_ref.shape[0]
    W = pm_ref.shape[0]
    S = pm_ref.shape[1]
    Hp = x_ref.shape[1] // Cin
    P = (Hp + 2) * S
    Ntot = o_ref.shape[2]
    Lpad = pad1_ref.shape[1]
    bf16 = jnp.bfloat16

    # ---- halo zeroing (only the pad rows / slack; interiors are fully rewritten).
    # Re-done every step so a megacore-split "parallel" grid axis stays correct.
    pad1_ref[:, 0:S] = jnp.zeros((Cin, S), bf16)
    pad2_ref[:, 0:S + 1] = jnp.zeros((Cmid, S + 1), bf16)
    for b in range(B):
        lo = b * P + (Hp + 1) * S
        hi = (b + 1) * P + S if b + 1 < B else Lpad
        pad1_ref[:, lo:hi] = jnp.zeros((Cin, hi - lo), bf16)
    lo2 = (B - 1) * P + (Hp + 1) * S
    pad2_ref[:, lo2:Lpad] = jnp.zeros((Cmid, Lpad - lo2), bf16)

    # ---------------- AvgPool2d(2, 2) ----------------
    pm = pm_ref[...]                                         # bf16, 0.25 entries exact
    for b in range(B):
        xb = x_ref[b]                                        # (Cin*Hp, 2W), lane-dense
        xr = (xb[:, :W] + xb[:, W:]).astype(bf16)            # row-phase add
        # column pairs folded (x0.25) + left/right zero padding placed on the MXU
        pooled = jnp.dot(xr, pm, preferred_element_type=jnp.float32)   # (Cin*Hp, S)
        pooled = pooled.reshape(Cin, Hp, S)                  # leading-dim split only
        base = b * P + S
        # NOTE: a single contiguous store of pooled.reshape(Cin, Hp*S) would be
        # cheaper, but that minor-dim relayout is not a guaranteed Mosaic shape
        # cast; per padded-row masked stores are the safe form.
        for r in range(Hp):
            pad1_ref[:, base + r * S: base + (r + 1) * S] = pooled[:, r, :].astype(bf16)

    # Dropout2d is identity in inference mode.
    # TODO(synk): training-mode per-channel stochastic masking not implemented.

    mask = mask_ref[...]                                     # (1, Ntot)

    # ---------------- Conv1 3x3 "same" (+ folded BN) + ReLU ----------------
    # 9 accumulating tap matmuls, bf16 operands, f32 accumulation; no patch scratch.
    acc1 = None
    for dy in range(3):
        for dx in range(3):
            off = dy * S + dx
            t = jnp.dot(w1_ref[dy * 3 + dx], pad1_ref[:, off:off + Ntot],
                        preferred_element_type=jnp.float32)  # (Cmid, Ntot)
            acc1 = t if acc1 is None else acc1 + t
    h1 = jnp.maximum(acc1 + b1_ref[...], 0.0) * mask         # junk lanes -> 0 (conv2 padding)
    # one contiguous lane-dense interior store (masked junk supplies the zero padding)
    pad2_ref[:, S + 1:S + 1 + Ntot] = h1.astype(bf16)

    # ---------------- Conv2 3x3 "same" (+ folded BN) + ReLU ----------------
    acc2 = None
    for dy in range(3):
        for dx in range(3):
            off = dy * S + dx
            t = jnp.dot(w2_ref[dy * 3 + dx], pad2_ref[:, off:off + Ntot],
                        preferred_element_type=jnp.float32)  # (Cout, Ntot)
            acc2 = t if acc2 is None else acc2 + t
    h2 = jnp.maximum(acc2 + b2_ref[...], 0.0)

    # lane-dense store; the wrapper strips junk lanes / un-folds the batch.
    o_ref[0] = h2.astype(o_ref.dtype)


def init_params(key, in_channels, out_channels):
    """Parameters matching the PyTorch module after __init__/weight_init (eval mode)."""
    k1, k2 = jax.random.split(key)
    std1 = float(np.sqrt(2.0 / (in_channels * 9)))    # kaiming_normal, fan_in, relu
    std2 = float(np.sqrt(2.0 / (out_channels * 9)))
    w1 = jax.random.normal(k1, (out_channels, in_channels, 3, 3), jnp.float32) * std1
    w2 = jax.random.normal(k2, (out_channels, out_channels, 3, 3), jnp.float32) * std2
    zeros_c = jnp.zeros((out_channels,), jnp.float32)
    ones_c = jnp.ones((out_channels,), jnp.float32)
    return {
        "w1": w1, "b1": zeros_c,
        "bn1_gamma": ones_c, "bn1_beta": zeros_c, "bn1_mean": zeros_c, "bn1_var": ones_c,
        "w2": w2, "b2": zeros_c,
        "bn2_gamma": ones_c, "bn2_beta": zeros_c, "bn2_mean": zeros_c, "bn2_var": ones_c,
    }


def _fold_conv_bn(w_oihw, b, gamma, beta, mean, var, eps):
    """Fold conv bias + BatchNorm (eval) into per-tap weight matrices and a bias column."""
    s = gamma / jnp.sqrt(var + eps)                               # (Co,)
    w = w_oihw * s[:, None, None, None]
    co, ci = w.shape[0], w.shape[1]
    taps = jnp.transpose(w, (2, 3, 0, 1)).reshape(9, co, ci)      # taps[ky*3+kx] = w[:,:,ky,kx]
    bias = (b - mean) * s + beta
    return taps.astype(jnp.bfloat16), bias.reshape(co, 1).astype(jnp.float32)


def down_forward(x_nchw, params, eps=1e-5):
    N, Cin, H, W = x_nchw.shape
    if H % 2 or W % 2:
        raise ValueError("Down kernel assumes even H and W (AvgPool2d(2) exact case).")
    Hp, Wp = H // 2, W // 2
    S = Wp + 2                       # padded row stride
    Npos = Hp * S                    # flat padded positions covering one image's output rows
    P = (Hp + 2) * S                 # per-image stride in the flat padded layout
    Cmid = params["w1"].shape[0]
    Cout = params["w2"].shape[0]

    # Fold several batch images onto the lane axis per grid step (lane-dense out_spec,
    # amortised per-step overhead).  B_TILE must divide N; cap lanes at ~1024.
    cap = max(1, 1024 // P)
    B_TILE = 1
    for d in range(min(N, cap), 0, -1):
        if N % d == 0:
            B_TILE = d
            break
    G = N // B_TILE
    Ntot = (B_TILE - 1) * P + Npos                       # conv matmul N / output lane width
    Lpad = -(-(B_TILE * P + 2) // 128) * 128             # flat-padded scratch length

    w1t, b1f = _fold_conv_bn(params["w1"], params["b1"], params["bn1_gamma"],
                             params["bn1_beta"], params["bn1_mean"], params["bn1_var"], eps)
    w2t, b2f = _fold_conv_bn(params["w2"], params["b2"], params["bn2_gamma"],
                             params["bn2_beta"], params["bn2_mean"], params["bn2_var"], eps)

    # Free (contiguous) reshape: merge (Cin, Hp) and the (2, W) row-pool phases.
    # Keep the caller's dtype (no forced f32 upcast -> fewer HBM bytes if bf16 is passed).
    x5 = x_nchw.reshape(N, Cin * Hp, 2 * W)

    # Constant column-pool matrix: maps W input cols -> padded row [0, 0.25*pooled, 0].
    pm = np.zeros((W, S), np.float32)
    cols = np.arange(Wp)
    pm[2 * cols, cols + 1] = 0.25
    pm[2 * cols + 1, cols + 1] = 0.25
    pm = jnp.asarray(pm, dtype=jnp.bfloat16)             # 0.25 is exact in bf16

    # Validity mask over the folded lane axis: 1 on real output pixels, 0 on the
    # per-row junk lanes and the inter-image gap positions.
    mk_img = np.zeros((Hp + 2, S), np.float32)
    mk_img[:Hp, :Wp] = 1.0
    mk = np.tile(mk_img.reshape(1, -1), (1, B_TILE))[:, :Ntot]
    mk = jnp.asarray(mk)

    # VMEM budget derived from actual shapes (double-buffered blocks + bf16 scratches).
    in_item = jnp.dtype(x5.dtype).itemsize
    vmem_bytes = (
        2 * B_TILE * Cin * Hp * 2 * W * in_item          # input block (x2 buffers)
        + 2 * Cout * Ntot * 4                            # output block (x2 buffers)
        + 2 * (W * S * 2 + Ntot * 4                      # pm (bf16) + mask (f32)
               + 9 * (Cmid * Cin + Cout * Cmid) * 2      # per-tap weights (bf16)
               + (Cmid + Cout) * 4)                      # biases
        + (Cin + Cmid) * Lpad * 2                        # bf16 flat-padded scratches
    )
    vmem_limit = int(min(100 << 20, max(4 << 20, 2 * vmem_bytes + (1 << 20))))

    # TODO(synk): for very large images (v7x 64 MiB VMEM / batch-1 megacore) add an
    # Hp-tiled "parallel" grid axis with a 1-row halo; at these sizes one block fits.
    out_wide = pl.pallas_call(
        _down_kernel,
        out_shape=jax.ShapeDtypeStruct((G, Cout, Ntot), jnp.float32),
        grid_spec=pltpu.PrefetchScalarGridSpec(
            num_scalar_prefetch=0,
            grid=(G,),
            in_specs=[
                pl.BlockSpec((B_TILE, Cin * Hp, 2 * W), lambda g: (g, 0, 0)),
                pl.BlockSpec((W, S), lambda g: (0, 0)),
                pl.BlockSpec((1, Ntot), lambda g: (0, 0)),
                pl.BlockSpec((9, Cmid, Cin), lambda g: (0, 0, 0)),
                pl.BlockSpec((Cmid, 1), lambda g: (0, 0)),
                pl.BlockSpec((9, Cout, Cmid), lambda g: (0, 0, 0)),
                pl.BlockSpec((Cout, 1), lambda g: (0, 0)),
            ],
            out_specs=pl.BlockSpec((1, Cout, Ntot), lambda g: (g, 0, 0)),
            scratch_shapes=[
                pltpu.VMEM((Cin, Lpad), jnp.bfloat16),    # flat-padded pooled input
                pltpu.VMEM((Cmid, Lpad), jnp.bfloat16),   # flat-padded conv1 activation
            ],
        ),
        compiler_params=pltpu.CompilerParams(
            dimension_semantics=("parallel",),
            vmem_limit_bytes=vmem_limit,
        ),
    )(x5, pm, mk, w1t, b1f, w2t, b2f)

    # Un-fold the batch and strip the junk lanes -> NCHW.
    # TODO(synk): downstream consumers could take the wide (G, Cout, Ntot) layout
    # directly to avoid this extra XLA pass over the (small) output.
    parts = [out_wide[:, :, b * P:b * P + Npos].reshape(G, Cout, Hp, S)[:, :, :, :Wp]
             for b in range(B_TILE)]
    return jnp.stack(parts, axis=1).reshape(N, Cout, Hp, Wp)


def down_reference(x_nchw, params, eps=1e-5):
    """Pure-JAX reference of the same (inference-mode) forward pass, in f32."""
    x = x_nchw.astype(jnp.float32)
    N, C, H, W = x.shape
    h = x.reshape(N, C, H // 2, 2, W // 2, 2).mean(axis=(3, 5))
    for i in (1, 2):
        w = params[f"w{i}"]
        b = params[f"b{i}"]
        g = params[f"bn{i}_gamma"]
        be = params[f"bn{i}_beta"]
        mu = params[f"bn{i}_mean"]
        var = params[f"bn{i}_var"]
        dn = jax.lax.conv_dimension_numbers(h.shape, w.shape, ("NCHW", "OIHW", "NCHW"))
        h = jax.lax.conv_general_dilated(h, w, (1, 1), "SAME", dimension_numbers=dn,
                                         precision=jax.lax.Precision.HIGHEST)
        h = h + b[None, :, None, None]
        h = (h - mu[None, :, None, None]) / jnp.sqrt(var[None, :, None, None] + eps) \
            * g[None, :, None, None] + be[None, :, None, None]
        h = jnp.maximum(h, 0.0)
    return h


if __name__ == "__main__":
    key = jax.random.PRNGKey(0)
    kx, kp = jax.random.split(key)

    N, Cin, Cout, H, W = 2, 4, 8, 16, 16
    x = jax.random.normal(kx, (N, Cin, H, W), jnp.float32)
    params = init_params(kp, Cin, Cout)

    out = jax.block_until_ready(down_forward(x, params))
    ref = down_reference(x, params)

    assert out.shape == (N, Cout, H // 2, W // 2), out.shape
    # bf16 pool/conv operands + bf16 pad scratches (all f32 accumulation) vs. an
    # all-f32 reference -> loose tolerance.
    np.testing.assert_allclose(np.asarray(out), np.asarray(ref), rtol=2e-2, atol=2e-2)

    print("KERNEL_OK")
</pallas_src>

<mosaic_0001>
module attributes {stable_mosaic.version = 11 : i64} {
  func.func @_down_kernel(%arg0: i32, %arg1: memref<2x32x32xf32, #tpu.memory_space<vmem>>, %arg2: memref<16x10xbf16, #tpu.memory_space<vmem>>, %arg3: memref<1x180xf32, #tpu.memory_space<vmem>>, %arg4: memref<9x8x4xbf16, #tpu.memory_space<vmem>>, %arg5: memref<8x1xf32, #tpu.memory_space<vmem>>, %arg6: memref<9x8x8xbf16, #tpu.memory_space<vmem>>, %arg7: memref<8x1xf32, #tpu.memory_space<vmem>>, %arg8: memref<1x8x180xf32, #tpu.memory_space<vmem>>, %arg9: memref<4x256xbf16, #tpu.memory_space<vmem>>, %arg10: memref<8x256xbf16, #tpu.memory_space<vmem>>) attributes {dimension_semantics = [#tpu.dimension_semantics<parallel>], iteration_bounds = array<i64: 1>, scalar_prefetch = 0 : i64, scratch_operands = 2 : i64, tpu.core_type = #tpu.core_type<tc>, window_params = [{transform_indices = @transform_0, window_bounds = array<i64: 2, 32, 32>}, {pipeline_mode = #tpu.pipeline_mode<synchronous>, transform_indices = @transform_1, window_bounds = array<i64: 16, 10>}, {pipeline_mode = #tpu.pipeline_mode<synchronous>, transform_indices = @transform_2, window_bounds = array<i64: 1, 180>}, {pipeline_mode = #tpu.pipeline_mode<synchronous>, transform_indices = @transform_3, window_bounds = array<i64: 9, 8, 4>}, {pipeline_mode = #tpu.pipeline_mode<synchronous>, transform_indices = @transform_4, window_bounds = array<i64: 8, 1>}, {pipeline_mode = #tpu.pipeline_mode<synchronous>, transform_indices = @transform_5, window_bounds = array<i64: 9, 8, 8>}, {pipeline_mode = #tpu.pipeline_mode<synchronous>, transform_indices = @transform_6, window_bounds = array<i64: 8, 1>}, {transform_indices = @transform_7, window_bounds = array<i64: 1, 8, 180>}]} {
    %cst = arith.constant 0.000000e+00 : bf16
    %0 = vector.broadcast %cst : bf16 to vector<4x10xbf16>
    %c0 = arith.constant 0 : index
    %c0_0 = arith.constant 0 : index
    %1 = vector.load %arg9[%c0, %c0_0] : memref<4x256xbf16, #tpu.memory_space<vmem>>, vector<4x10xbf16>
    tpu.vector_store %arg9[%c0, %c0_0], %0 {strides = array<i32>} : memref<4x256xbf16, #tpu.memory_space<vmem>>, vector<4x10xbf16>,
    %cst_1 = arith.constant 0.000000e+00 : bf16
    %2 = vector.broadcast %cst_1 : bf16 to vector<8x11xbf16>
    %c0_2 = arith.constant 0 : index
    %c0_3 = arith.constant 0 : index
    %3 = vector.load %arg10[%c0_2, %c0_3] : memref<8x256xbf16, #tpu.memory_space<vmem>>, vector<8x11xbf16>
    tpu.vector_store %arg10[%c0_2, %c0_3], %2 {strides = array<i32>} : memref<8x256xbf16, #tpu.memory_space<vmem>>, vector<8x11xbf16>,
    %cst_4 = arith.constant 0.000000e+00 : bf16
    %4 = vector.broadcast %cst_4 : bf16 to vector<4x20xbf16>
    %c0_5 = arith.constant 0 : index
    %c90 = arith.constant 90 : index
    %5 = vector.load %arg9[%c0_5, %c90] : memref<4x256xbf16, #tpu.memory_space<vmem>>, vector<4x20xbf16>
    tpu.vector_store %arg9[%c0_5, %c90], %4 {strides = array<i32>} : memref<4x256xbf16, #tpu.memory_space<vmem>>, vector<4x20xbf16>,
    %cst_6 = arith.constant 0.000000e+00 : bf16
    %6 = vector.broadcast %cst_6 : bf16 to vector<4x66xbf16>
    %c0_7 = arith.constant 0 : index
    %c190 = arith.constant 190 : index
    %7 = vector.load %arg9[%c0_7, %c190] : memref<4x256xbf16, #tpu.memory_space<vmem>>, vector<4x66xbf16>
    tpu.vector_store %arg9[%c0_7, %c190], %6 {strides = array<i32>} : memref<4x256xbf16, #tpu.memory_space<vmem>>, vector<4x66xbf16>,
    %cst_8 = arith.constant 0.000000e+00 : bf16
    %8 = vector.broadcast %cst_8 : bf16 to vector<8x66xbf16>
    %c0_9 = arith.constant 0 : index
    %c190_10 = arith.constant 190 : index
    %9 = vector.load %arg10[%c0_9, %c190_10] : memref<8x256xbf16, #tpu.memory_space<vmem>>, vector<8x66xbf16>
    tpu.vector_store %arg10[%c0_9, %c190_10], %8 {strides = array<i32>} : memref<8x256xbf16, #tpu.memory_space<vmem>>, vector<8x66xbf16>,
    %c0_11 = arith.constant 0 : index
    %c0_12 = arith.constant 0 : index
    %10 = vector.load %arg2[%c0_11, %c0_12] : memref<16x10xbf16, #tpu.memory_space<vmem>>, vector<16x10xbf16>
    %c0_13 = arith.constant 0 : index
    %c0_14 = arith.constant 0 : index
    %c0_15 = arith.constant 0 : index
    %11 = vector.load %arg1[%c0_13, %c0_14, %c0_15] : memref<2x32x32xf32, #tpu.memory_space<vmem>>, vector<1x32x32xf32>
    %12 = vector.shape_cast %11 : vector<1x32x32xf32> to vector<32x32xf32>
    %13 = vector.extract_strided_slice %12 {offsets = [0, 0], sizes = [32, 16], strides = [1, 1]} : vector<32x32xf32> to vector<32x16xf32>
    %14 = vector.extract_strided_slice %12 {offsets = [0, 16], sizes = [32, 16], strides = [1, 1]} : vector<32x32xf32> to vector<32x16xf32>
    %15 = arith.addf %13, %14 : vector<32x16xf32>
    %16 = arith.truncf %15 : vector<32x16xf32> to vector<32x16xbf16>
    %cst_16 = arith.constant dense<0.000000e+00> : vector<32x10xf32>
    %17 = tpu.matmul %16, %10, %cst_16 {dimension_numbers = #tpu.dot_dimension_numbers<[1], [0], [0], [1], [0, 0, 1, 1], [], []>} : vector<32x16xbf16>, vector<16x10xbf16>, vector<32x10xf32> -> vector<32x10xf32>
    %18 = vector.shape_cast %17 : vector<32x10xf32> to vector<4x8x10xf32>
    %19 = vector.extract_strided_slice %18 {offsets = [0, 0, 0], sizes = [4, 1, 10], strides = [1, 1, 1]} : vector<4x8x10xf32> to vector<4x1x10xf32>
    %20 = vector.shape_cast %19 : vector<4x1x10xf32> to vector<4x10xf32>
    %21 = arith.truncf %20 : vector<4x10xf32> to vector<4x10xbf16>
    %c0_17 = arith.constant 0 : index
    %c10 = arith.constant 10 : index
    %22 = vector.load %arg9[%c0_17, %c10] : memref<4x256xbf16, #tpu.memory_space<vmem>>, vector<4x10xbf16>
    tpu.vector_store %arg9[%c0_17, %c10], %21 {strides = array<i32>} : memref<4x256xbf16, #tpu.memory_space<vmem>>, vector<4x10xbf16>,
    %23 = vector.extract_strided_slice %18 {offsets = [0, 1, 0], sizes = [4, 1, 10], strides = [1, 1, 1]} : vector<4x8x10xf32> to vector<4x1x10xf32>
    %24 = vector.shape_cast %23 : vector<4x1x10xf32> to vector<4x10xf32>
    %25 = arith.truncf %24 : vector<4x10xf32> to vector<4x10xbf16>
    %c0_18 = arith.constant 0 : index
    %c20 = arith.constant 20 : index
    %26 = vector.load %arg9[%c0_18, %c20] : memref<4x256xbf16, #tpu.memory_space<vmem>>, vector<4x10xbf16>
    tpu.vector_store %arg9[%c0_18, %c20], %25 {strides = array<i32>} : memref<4x256xbf16, #tpu.memory_space<vmem>>, vector<4x10xbf16>,
    %27 = vector.extract_strided_slice %18 {offsets = [0, 2, 0], sizes = [4, 1, 10], strides = [1, 1, 1]} : vector<4x8x10xf32> to vector<4x1x10xf32>
    %28 = vector.shape_cast %27 : vector<4x1x10xf32> to vector<4x10xf32>
    %29 = arith.truncf %28 : vector<4x10xf32> to vector<4x10xbf16>
    %c0_19 = arith.constant 0 : index
    %c30 = arith.constant 30 : index
    %30 = vector.load %arg9[%c0_19, %c30] : memref<4x256xbf16, #tpu.memory_space<vmem>>, vector<4x10xbf16>
    tpu.vector_store %arg9[%c0_19, %c30], %29 {strides = array<i32>} : memref<4x256xbf16, #tpu.memory_space<vmem>>, vector<4x10xbf16>,
    %31 = vector.extract_strided_slice %18 {offsets = [0, 3, 0], sizes = [4, 1, 10], strides = [1, 1, 1]} : vector<4x8x10xf32> to vector<4x1x10xf32>
    %32 = vector.shape_cast %31 : vector<4x1x10xf32> to vector<4x10xf32>
    %33 = arith.truncf %32 : vector<4x10xf32> to vector<4x10xbf16>
    %c0_20 = arith.constant 0 : index
    %c40 = arith.constant 40 : index
    %34 = vector.load %arg9[%c0_20, %c40] : memref<4x256xbf16, #tpu.memory_space<vmem>>, vector<4x10xbf16>
    tpu.vector_store %arg9[%c0_20, %c40], %33 {strides = array<i32>} : memref<4x256xbf16, #tpu.memory_space<vmem>>, vector<4x10xbf16>,
    %35 = vector.extract_strided_slice %18 {offsets = [0, 4, 0], sizes = [4, 1, 10], strides = [1, 1, 1]} : vector<4x8x10xf32> to vector<4x1x10xf32>
    %36 = vector.shape_cast %35 : vector<4x1x10xf32> to vector<4x10xf32>
    %37 = arith.truncf %36 : vector<4x10xf32> to vector<4x10xbf16>
    %c0_21 = arith.constant 0 : index
    %c50 = arith.constant 50 : index
    %38 = vector.load %arg9[%c0_21, %c50] : memref<4x256xbf16, #tpu.memory_space<vmem>>, vector<4x10xbf16>
    tpu.vector_store %arg9[%c0_21, %c50], %37 {strides = array<i32>} : memref<4x256xbf16, #tpu.memory_space<vmem>>, vector<4x10xbf16>,
    %39 = vector.extract_strided_slice %18 {offsets = [0, 5, 0], sizes = [4, 1, 10], strides = [1, 1, 1]} : vector<4x8x10xf32> to vector<4x1x10xf32>
    %40 = vector.shape_cast %39 : vector<4x1x10xf32> to vector<4x10xf32>
    %41 = arith.truncf %40 : vector<4x10xf32> to vector<4x10xbf16>
    %c0_22 = arith.constant 0 : index
    %c60 = arith.constant 60 : index
    %42 = vector.load %arg9[%c0_22, %c60] : memref<4x256xbf16, #tpu.memory_space<vmem>>, vector<4x10xbf16>
    tpu.vector_store %arg9[%c0_22, %c60], %41 {strides = array<i32>} : memref<4x256xbf16, #tpu.memory_space<vmem>>, vector<4x10xbf16>,
    %43 = vector.extract_strided_slice %18 {offsets = [0, 6, 0], sizes = [4, 1, 10], strides = [1, 1, 1]} : vector<4x8x10xf32> to vector<4x1x10xf32>
    %44 = vector.shape_cast %43 : vector<4x1x10xf32> to vector<4x10xf32>
    %45 = arith.truncf %44 : vector<4x10xf32> to vector<4x10xbf16>
    %c0_23 = arith.constant 0 : index
    %c70 = arith.constant 70 : index
    %46 = vector.load %arg9[%c0_23, %c70] : memref<4x256xbf16, #tpu.memory_space<vmem>>, vector<4x10xbf16>
    tpu.vector_store %arg9[%c0_23, %c70], %45 {strides = array<i32>} : memref<4x256xbf16, #tpu.memory_space<vmem>>, vector<4x10xbf16>,
    %47 = vector.extract_strided_slice %18 {offsets = [0, 7, 0], sizes = [4, 1, 10], strides = [1, 1, 1]} : vector<4x8x10xf32> to vector<4x1x10xf32>
    %48 = vector.shape_cast %47 : vector<4x1x10xf32> to vector<4x10xf32>
    %49 = arith.truncf %48 : vector<4x10xf32> to vector<4x10xbf16>
    %c0_24 = arith.constant 0 : index
    %c80 = arith.constant 80 : index
    %50 = vector.load %arg9[%c0_24, %c80] : memref<4x256xbf16, #tpu.memory_space<vmem>>, vector<4x10xbf16>
    tpu.vector_store %arg9[%c0_24, %c80], %49 {strides = array<i32>} : memref<4x256xbf16, #tpu.memory_space<vmem>>, vector<4x10xbf16>,
    %c1 = arith.constant 1 : index
    %c0_25 = arith.constant 0 : index
    %c0_26 = arith.constant 0 : index
    %51 = vector.load %arg1[%c1, %c0_25, %c0_26] : memref<2x32x32xf32, #tpu.memory_space<vmem>>, vector<1x32x32xf32>
    %52 = vector.shape_cast %51 : vector<1x32x32xf32> to vector<32x32xf32>
    %53 = vector.extract_strided_slice %52 {offsets = [0, 0], sizes = [32, 16], strides = [1, 1]} : vector<32x32xf32> to vector<32x16xf32>
    %54 = vector.extract_strided_slice %52 {offsets = [0, 16], sizes = [32, 16], strides = [1, 1]} : vector<32x32xf32> to vector<32x16xf32>
    %55 = arith.addf %53, %54 : vector<32x16xf32>
    %56 = arith.truncf %55 : vector<32x16xf32> to vector<32x16xbf16>
    %cst_27 = arith.constant dense<0.000000e+00> : vector<32x10xf32>
    %57 = tpu.matmul %56, %10, %cst_27 {dimension_numbers = #tpu.dot_dimension_numbers<[1], [0], [0], [1], [0, 0, 1, 1], [], []>} : vector<32x16xbf16>, vector<16x10xbf16>, vector<32x10xf32> -> vector<32x10xf32>
    %58 = vector.shape_cast %57 : vector<32x10xf32> to vector<4x8x10xf32>
    %59 = vector.extract_strided_slice %58 {offsets = [0, 0, 0], sizes = [4, 1, 10], strides = [1, 1, 1]} : vector<4x8x10xf32> to vector<4x1x10xf32>
    %60 = vector.shape_cast %59 : vector<4x1x10xf32> to vector<4x10xf32>
    %61 = arith.truncf %60 : vector<4x10xf32> to vector<4x10xbf16>
    %c0_28 = arith.constant 0 : index
    %c110 = arith.constant 110 : index
    %62 = vector.load %arg9[%c0_28, %c110] : memref<4x256xbf16, #tpu.memory_space<vmem>>, vector<4x10xbf16>
    tpu.vector_store %arg9[%c0_28, %c110], %61 {strides = array<i32>} : memref<4x256xbf16, #tpu.memory_space<vmem>>, vector<4x10xbf16>,
    %63 = vector.extract_strided_slice %58 {offsets = [0, 1, 0], sizes = [4, 1, 10], strides = [1, 1, 1]} : vector<4x8x10xf32> to vector<4x1x10xf32>
    %64 = vector.shape_cast %63 : vector<4x1x10xf32> to vector<4x10xf32>
    %65 = arith.truncf %64 : vector<4x10xf32> to vector<4x10xbf16>
    %c0_29 = arith.constant 0 : index
    %c120 = arith.constant 120 : index
    %66 = vector.load %arg9[%c0_29, %c120] : memref<4x256xbf16, #tpu.memory_space<vmem>>, vector<4x10xbf16>
    tpu.vector_store %arg9[%c0_29, %c120], %65 {strides = array<i32>} : memref<4x256xbf16, #tpu.memory_space<vmem>>, vector<4x10xbf16>,
    %67 = vector.extract_strided_slice %58 {offsets = [0, 2, 0], sizes = [4, 1, 10], strides = [1, 1, 1]} : vector<4x8x10xf32> to vector<4x1x10xf32>
    %68 = vector.shape_cast %67 : vector<4x1x10xf32> to vector<4x10xf32>
    %69 = arith.truncf %68 : vector<4x10xf32> to vector<4x10xbf16>
    %c0_30 = arith.constant 0 : index
    %c130 = arith.constant 130 : index
    %70 = vector.load %arg9[%c0_30, %c130] : memref<4x256xbf16, #tpu.memory_space<vmem>>, vector<4x10xbf16>
    tpu.vector_store %arg9[%c0_30, %c130], %69 {strides = array<i32>} : memref<4x256xbf16, #tpu.memory_space<vmem>>, vector<4x10xbf16>,
    %71 = vector.extract_strided_slice %58 {offsets = [0, 3, 0], sizes = [4, 1, 10], strides = [1, 1, 1]} : vector<4x8x10xf32> to vector<4x1x10xf32>
    %72 = vector.shape_cast %71 : vector<4x1x10xf32> to vector<4x10xf32>
    %73 = arith.truncf %72 : vector<4x10xf32> to vector<4x10xbf16>
    %c0_31 = arith.constant 0 : index
    %c140 = arith.constant 140 : index
    %74 = vector.load %arg9[%c0_31, %c140] : memref<4x256xbf16, #tpu.memory_space<vmem>>, vector<4x10xbf16>
    tpu.vector_store %arg9[%c0_31, %c140], %73 {strides = array<i32>} : memref<4x256xbf16, #tpu.memory_space<vmem>>, vector<4x10xbf16>,
    %75 = vector.extract_strided_slice %58 {offsets = [0, 4, 0], sizes = [4, 1, 10], strides = [1, 1, 1]} : vector<4x8x10xf32> to vector<4x1x10xf32>
    %76 = vector.shape_cast %75 : vector<4x1x10xf32> to vector<4x10xf32>
    %77 = arith.truncf %76 : vector<4x10xf32> to vector<4x10xbf16>
    %c0_32 = arith.constant 0 : index
    %c150 = arith.constant 150 : index
    %78 = vector.load %arg9[%c0_32, %c150] : memref<4x256xbf16, #tpu.memory_space<vmem>>, vector<4x10xbf16>
    tpu.vector_store %arg9[%c0_32, %c150], %77 {strides = array<i32>} : memref<4x256xbf16, #tpu.memory_space<vmem>>, vector<4x10xbf16>,
    %79 = vector.extract_strided_slice %58 {offsets = [0, 5, 0], sizes = [4, 1, 10], strides = [1, 1, 1]} : vector<4x8x10xf32> to vector<4x1x10xf32>
    %80 = vector.shape_cast %79 : vector<4x1x10xf32> to vector<4x10xf32>
    %81 = arith.truncf %80 : vector<4x10xf32> to vector<4x10xbf16>
    %c0_33 = arith.constant 0 : index
    %c160 = arith.constant 160 : index
    %82 = vector.load %arg9[%c0_33, %c160] : memref<4x256xbf16, #tpu.memory_space<vmem>>, vector<4x10xbf16>
    tpu.vector_store %arg9[%c0_33, %c160], %81 {strides = array<i32>} : memref<4x256xbf16, #tpu.memory_space<vmem>>, vector<4x10xbf16>,
    %83 = vector.extract_strided_slice %58 {offsets = [0, 6, 0], sizes = [4, 1, 10], strides = [1, 1, 1]} : vector<4x8x10xf32> to vector<4x1x10xf32>
    %84 = vector.shape_cast %83 : vector<4x1x10xf32> to vector<4x10xf32>
    %85 = arith.truncf %84 : vector<4x10xf32> to vector<4x10xbf16>
    %c0_34 = arith.constant 0 : index
    %c170 = arith.constant 170 : index
    %86 = vector.load %arg9[%c0_34, %c170] : memref<4x256xbf16, #tpu.memory_space<vmem>>, vector<4x10xbf16>
    tpu.vector_store %arg9[%c0_34, %c170], %85 {strides = array<i32>} : memref<4x256xbf16, #tpu.memory_space<vmem>>, vector<4x10xbf16>,
    %87 = vector.extract_strided_slice %58 {offsets = [0, 7, 0], sizes = [4, 1, 10], strides = [1, 1, 1]} : vector<4x8x10xf32> to vector<4x1x10xf32>
    %88 = vector.shape_cast %87 : vector<4x1x10xf32> to vector<4x10xf32>
    %89 = arith.truncf %88 : vector<4x10xf32> to vector<4x10xbf16>
    %c0_35 = arith.constant 0 : index
    %c180 = arith.constant 180 : index
    %90 = vector.load %arg9[%c0_35, %c180] : memref<4x256xbf16, #tpu.memory_space<vmem>>, vector<4x10xbf16>
    tpu.vector_store %arg9[%c0_35, %c180], %89 {strides = array<i32>} : memref<4x256xbf16, #tpu.memory_space<vmem>>, vector<4x10xbf16>,
    %c0_36 = arith.constant 0 : index
    %c0_37 = arith.constant 0 : index
    %91 = vector.load %arg3[%c0_36, %c0_37] : memref<1x180xf32, #tpu.memory_space<vmem>>, vector<1x180xf32>
    %c0_38 = arith.constant 0 : index
    %c0_39 = arith.constant 0 : index
    %c0_40 = arith.constant 0 : index
    %92 = vector.load %arg4[%c0_38, %c0_39, %c0_40] : memref<9x8x4xbf16, #tpu.memory_space<vmem>>, vector<1x8x4xbf16>
    %93 = vector.shape_cast %92 : vector<1x8x4xbf16> to vector<8x4xbf16>
    %c0_41 = arith.constant 0 : index
    %c0_42 = arith.constant 0 : index
    %94 = vector.load %arg9[%c0_41, %c0_42] : memref<4x256xbf16, #tpu.memory_space<vmem>>, vector<4x180xbf16>
    %cst_43 = arith.constant dense<0.000000e+00> : vector<8x180xf32>
    %95 = tpu.matmul %93, %94, %cst_43 {dimension_numbers = #tpu.dot_dimension_numbers<[1], [0], [0], [1], [0, 0, 1, 1], [], []>} : vector<8x4xbf16>, vector<4x180xbf16>, vector<8x180xf32> -> vector<8x180xf32>
    %c1_44 = arith.constant 1 : index
    %c0_45 = arith.constant 0 : index
    %c0_46 = arith.constant 0 : index
    %96 = vector.load %arg4[%c1_44, %c0_45, %c0_46] : memref<9x8x4xbf16, #tpu.memory_space<vmem>>, vector<1x8x4xbf16>
    %97 = vector.shape_cast %96 : vector<1x8x4xbf16> to vector<8x4xbf16>
    %c0_47 = arith.constant 0 : index
    %c1_48 = arith.constant 1 : index
    %98 = vector.load %arg9[%c0_47, %c1_48] : memref<4x256xbf16, #tpu.memory_space<vmem>>, vector<4x180xbf16>
    %cst_49 = arith.constant dense<0.000000e+00> : vector<8x180xf32>
    %99 = tpu.matmul %97, %98, %cst_49 {dimension_numbers = #tpu.dot_dimension_numbers<[1], [0], [0], [1], [0, 0, 1, 1], [], []>} : vector<8x4xbf16>, vector<4x180xbf16>, vector<8x180xf32> -> vector<8x180xf32>
    %100 = arith.addf %95, %99 : vector<8x180xf32>
    %c2 = arith.constant 2 : index
    %c0_50 = arith.constant 0 : index
    %c0_51 = arith.constant 0 : index
    %101 = vector.load %arg4[%c2, %c0_50, %c0_51] : memref<9x8x4xbf16, #tpu.memory_space<vmem>>, vector<1x8x4xbf16>
    %102 = vector.shape_cast %101 : vector<1x8x4xbf16> to vector<8x4xbf16>
    %c0_52 = arith.constant 0 : index
    %c2_53 = arith.constant 2 : index
    %103 = vector.load %arg9[%c0_52, %c2_53] : memref<4x256xbf16, #tpu.memory_space<vmem>>, vector<4x180xbf16>
    %cst_54 = arith.constant dense<0.000000e+00> : vector<8x180xf32>
    %104 = tpu.matmul %102, %103, %cst_54 {dimension_numbers = #tpu.dot_dimension_numbers<[1], [0], [0], [1], [0, 0, 1, 1], [], []>} : vector<8x4xbf16>, vector<4x180xbf16>, vector<8x180xf32> -> vector<8x180xf32>
    %105 = arith.addf %100, %104 : vector<8x180xf32>
    %c3 = arith.constant 3 : index
    %c0_55 = arith.constant 0 : index
    %c0_56 = arith.constant 0 : index
    %106 = vector.load %arg4[%c3, %c0_55, %c0_56] : memref<9x8x4xbf16, #tpu.memory_space<vmem>>, vector<1x8x4xbf16>
    %107 = vector.shape_cast %106 : vector<1x8x4xbf16> to vector<8x4xbf16>
    %c0_57 = arith.constant 0 : index
    %c10_58 = arith.constant 10 : index
    %108 = vector.load %arg9[%c0_57, %c10_58] : memref<4x256xbf16, #tpu.memory_space<vmem>>, vector<4x180xbf16>
    %cst_59 = arith.constant dense<0.000000e+00> : vector<8x180xf32>
    %109 = tpu.matmul %107, %108, %cst_59 {dimension_numbers = #tpu.dot_dimension_numbers<[1], [0], [0], [1], [0, 0, 1, 1], [], []>} : vector<8x4xbf16>, vector<4x180xbf16>, vector<8x180xf32> -> vector<8x180xf32>
    %110 = arith.addf %105, %109 : vector<8x180xf32>
    %c4 = arith.constant 4 : index
    %c0_60 = arith.constant 0 : index
    %c0_61 = arith.constant 0 : index
    %111 = vector.load %arg4[%c4, %c0_60, %c0_61] : memref<9x8x4xbf16, #tpu.memory_space<vmem>>, vector<1x8x4xbf16>
    %112 = vector.shape_cast %111 : vector<1x8x4xbf16> to vector<8x4xbf16>
    %c0_62 = arith.constant 0 : index
    %c11 = arith.constant 11 : index
    %113 = vector.load %arg9[%c0_62, %c11] : memref<4x256xbf16, #tpu.memory_space<vmem>>, vector<4x180xbf16>
    %cst_63 = arith.constant dense<0.000000e+00> : vector<8x180xf32>
    %114 = tpu.matmul %112, %113, %cst_63 {dimension_numbers = #tpu.dot_dimension_numbers<[1], [0], [0], [1], [0, 0, 1, 1], [], []>} : vector<8x4xbf16>, vector<4x180xbf16>, vector<8x180xf32> -> vector<8x180xf32>
    %115 = arith.addf %110, %114 : vector<8x180xf32>
    %c5 = arith.constant 5 : index
    %c0_64 = arith.constant 0 : index
    %c0_65 = arith.constant 0 : index
    %116 = vector.load %arg4[%c5, %c0_64, %c0_65] : memref<9x8x4xbf16, #tpu.memory_space<vmem>>, vector<1x8x4xbf16>
    %117 = vector.shape_cast %116 : vector<1x8x4xbf16> to vector<8x4xbf16>
    %c0_66 = arith.constant 0 : index
    %c12 = arith.constant 12 : index
    %118 = vector.load %arg9[%c0_66, %c12] : memref<4x256xbf16, #tpu.memory_space<vmem>>, vector<4x180xbf16>
    %cst_67 = arith.constant dense<0.000000e+00> : vector<8x180xf32>
    %119 = tpu.matmul %117, %118, %cst_67 {dimension_numbers = #tpu.dot_dimension_numbers<[1], [0], [0], [1], [0, 0, 1, 1], [], []>} : vector<8x4xbf16>, vector<4x180xbf16>, vector<8x180xf32> -> vector<8x180xf32>
    %120 = arith.addf %115, %119 : vector<8x180xf32>
    %c6 = arith.constant 6 : index
    %c0_68 = arith.constant 0 : index
    %c0_69 = arith.constant 0 : index
    %121 = vector.load %arg4[%c6, %c0_68, %c0_69] : memref<9x8x4xbf16, #tpu.memory_space<vmem>>, vector<1x8x4xbf16>
    %122 = vector.shape_cast %121 : vector<1x8x4xbf16> to vector<8x4xbf16>
    %c0_70 = arith.constant 0 : index
    %c20_71 = arith.constant 20 : index
    %123 = vector.load %arg9[%c0_70, %c20_71] : memref<4x256xbf16, #tpu.memory_space<vmem>>, vector<4x180xbf16>
    %cst_72 = arith.constant dense<0.000000e+00> : vector<8x180xf32>
    %124 = tpu.matmul %122, %123, %cst_72 {dimension_numbers = #tpu.dot_dimension_numbers<[1], [0], [0], [1], [0, 0, 1, 1], [], []>} : vector<8x4xbf16>, vector<4x180xbf16>, vector<8x180xf32> -> vector<8x180xf32>
    %125 = arith.addf %120, %124 : vector<8x180xf32>
    %c7 = arith.constant 7 : index
    %c0_73 = arith.constant 0 : index
    %c0_74 = arith.constant 0 : index
    %126 = vector.load %arg4[%c7, %c0_73, %c0_74] : memref<9x8x4xbf16, #tpu.memory_space<vmem>>, vector<1x8x4xbf16>
    %127 = vector.shape_cast %126 : vector<1x8x4xbf16> to vector<8x4xbf16>
    %c0_75 = arith.constant 0 : index
    %c21 = arith.constant 21 : index
    %128 = vector.load %arg9[%c0_75, %c21] : memref<4x256xbf16, #tpu.memory_space<vmem>>, vector<4x180xbf16>
    %cst_76 = arith.constant dense<0.000000e+00> : vector<8x180xf32>
    %129 = tpu.matmul %127, %128, %cst_76 {dimension_numbers = #tpu.dot_dimension_numbers<[1], [0], [0], [1], [0, 0, 1, 1], [], []>} : vector<8x4xbf16>, vector<4x180xbf16>, vector<8x180xf32> -> vector<8x180xf32>
    %130 = arith.addf %125, %129 : vector<8x180xf32>
    %c8 = arith.constant 8 : index
    %c0_77 = arith.constant 0 : index
    %c0_78 = arith.constant 0 : index
    %131 = vector.load %arg4[%c8, %c0_77, %c0_78] : memref<9x8x4xbf16, #tpu.memory_space<vmem>>, vector<1x8x4xbf16>
    %132 = vector.shape_cast %131 : vector<1x8x4xbf16> to vector<8x4xbf16>
    %c0_79 = arith.constant 0 : index
    %c22 = arith.constant 22 : index
    %133 = vector.load %arg9[%c0_79, %c22] : memref<4x256xbf16, #tpu.memory_space<vmem>>, vector<4x180xbf16>
    %cst_80 = arith.constant dense<0.000000e+00> : vector<8x180xf32>
    %134 = tpu.matmul %132, %133, %cst_80 {dimension_numbers = #tpu.dot_dimension_numbers<[1], [0], [0], [1], [0, 0, 1, 1], [], []>} : vector<8x4xbf16>, vector<4x180xbf16>, vector<8x180xf32> -> vector<8x180xf32>
    %135 = arith.addf %130, %134 : vector<8x180xf32>
    %c0_81 = arith.constant 0 : index
    %c0_82 = arith.constant 0 : index
    %136 = vector.load %arg5[%c0_81, %c0_82] : memref<8x1xf32, #tpu.memory_space<vmem>>, vector<8x1xf32>
    %137 = vector.broadcast %136 : vector<8x1xf32> to vector<8x180xf32>
    %138 = arith.addf %135, %137 : vector<8x180xf32>
    %cst_83 = arith.constant 0.000000e+00 : f32
    %139 = vector.broadcast %cst_83 : f32 to vector<8x180xf32>
    %140 = arith.maximumf %138, %139 : vector<8x180xf32>
    %141 = vector.broadcast %91 : vector<1x180xf32> to vector<8x180xf32>
    %142 = arith.mulf %140, %141 : vector<8x180xf32>
    %143 = arith.truncf %142 : vector<8x180xf32> to vector<8x180xbf16>
    %c0_84 = arith.constant 0 : index
    %c11_85 = arith.constant 11 : index
    %144 = vector.load %arg10[%c0_84, %c11_85] : memref<8x256xbf16, #tpu.memory_space<vmem>>, vector<8x180xbf16>
    tpu.vector_store %arg10[%c0_84, %c11_85], %143 {strides = array<i32>} : memref<8x256xbf16, #tpu.memory_space<vmem>>, vector<8x180xbf16>,
    %c0_86 = arith.constant 0 : index
    %c0_87 = arith.constant 0 : index
    %c0_88 = arith.constant 0 : index
    %145 = vector.load %arg6[%c0_86, %c0_87, %c0_88] : memref<9x8x8xbf16, #tpu.memory_space<vmem>>, vector<1x8x8xbf16>
    %146 = vector.shape_cast %145 : vector<1x8x8xbf16> to vector<8x8xbf16>
    %c0_89 = arith.constant 0 : index
    %c0_90 = arith.constant 0 : index
    %147 = vector.load %arg10[%c0_89, %c0_90] : memref<8x256xbf16, #tpu.memory_space<vmem>>, vector<8x180xbf16>
    %cst_91 = arith.constant dense<0.000000e+00> : vector<8x180xf32>
    %148 = tpu.matmul %146, %147, %cst_91 {dimension_numbers = #tpu.dot_dimension_numbers<[1], [0], [0], [1], [0, 0, 1, 1], [], []>} : vector<8x8xbf16>, vector<8x180xbf16>, vector<8x180xf32> -> vector<8x180xf32>
    %c1_92 = arith.constant 1 : index
    %c0_93 = arith.constant 0 : index
    %c0_94 = arith.constant 0 : index
    %149 = vector.load %arg6[%c1_92, %c0_93, %c0_94] : memref<9x8x8xbf16, #tpu.memory_space<vmem>>, vector<1x8x8xbf16>
    %150 = vector.shape_cast %149 : vector<1x8x8xbf16> to vector<8x8xbf16>
    %c0_95 = arith.constant 0 : index
    %c1_96 = arith.constant 1 : index
    %151 = vector.load %arg10[%c0_95, %c1_96] : memref<8x256xbf16, #tpu.memory_space<vmem>>, vector<8x180xbf16>
    %cst_97 = arith.constant dense<0.000000e+00> : vector<8x180xf32>
    %152 = tpu.matmul %150, %151, %cst_97 {dimension_numbers = #tpu.dot_dimension_numbers<[1], [0], [0], [1], [0, 0, 1, 1], [], []>} : vector<8x8xbf16>, vector<8x180xbf16>, vector<8x180xf32> -> vector<8x180xf32>
    %153 = arith.addf %148, %152 : vector<8x180xf32>
    %c2_98 = arith.constant 2 : index
    %c0_99 = arith.constant 0 : index
    %c0_100 = arith.constant 0 : index
    %154 = vector.load %arg6[%c2_98, %c0_99, %c0_100] : memref<9x8x8xbf16, #tpu.memory_space<vmem>>, vector<1x8x8xbf16>
    %155 = vector.shape_cast %154 : vector<1x8x8xbf16> to vector<8x8xbf16>
    %c0_101 = arith.constant 0 : index
    %c2_102 = arith.constant 2 : index
    %156 = vector.load %arg10[%c0_101, %c2_102] : memref<8x256xbf16, #tpu.memory_space<vmem>>, vector<8x180xbf16>
    %cst_103 = arith.constant dense<0.000000e+00> : vector<8x180xf32>
    %157 = tpu.matmul %155, %156, %cst_103 {dimension_numbers = #tpu.dot_dimension_numbers<[1], [0], [0], [1], [0, 0, 1, 1], [], []>} : vector<8x8xbf16>, vector<8x180xbf16>, vector<8x180xf32> -> vector<8x180xf32>
    %158 = arith.addf %153, %157 : vector<8x180xf32>
    %c3_104 = arith.constant 3 : index
    %c0_105 = arith.constant 0 : index
    %c0_106 = arith.constant 0 : index
    %159 = vector.load %arg6[%c3_104, %c0_105, %c0_106] : memref<9x8x8xbf16, #tpu.memory_space<vmem>>, vector<1x8x8xbf16>
    %160 = vector.shape_cast %159 : vector<1x8x8xbf16> to vector<8x8xbf16>
    %c0_107 = arith.constant 0 : index
    %c10_108 = arith.constant 10 : index
    %161 = vector.load %arg10[%c0_107, %c10_108] : memref<8x256xbf16, #tpu.memory_space<vmem>>, vector<8x180xbf16>
    %cst_109 = arith.constant dense<0.000000e+00> : vector<8x180xf32>
    %162 = tpu.matmul %160, %161, %cst_109 {dimension_numbers = #tpu.dot_dimension_numbers<[1], [0], [0], [1], [0, 0, 1, 1], [], []>} : vector<8x8xbf16>, vector<8x180xbf16>, vector<8x180xf32> -> vector<8x180xf32>
    %163 = arith.addf %158, %162 : vector<8x180xf32>
    %c4_110 = arith.constant 4 : index
    %c0_111 = arith.constant 0 : index
    %c0_112 = arith.constant 0 : index
    %164 = vector.load %arg6[%c4_110, %c0_111, %c0_112] : memref<9x8x8xbf16, #tpu.memory_space<vmem>>, vector<1x8x8xbf16>
    %165 = vector.shape_cast %164 : vector<1x8x8xbf16> to vector<8x8xbf16>
    %c0_113 = arith.constant 0 : index
    %c11_114 = arith.constant 11 : index
    %166 = vector.load %arg10[%c0_113, %c11_114] : memref<8x256xbf16, #tpu.memory_space<vmem>>, vector<8x180xbf16>
    %cst_115 = arith.constant dense<0.000000e+00> : vector<8x180xf32>
    %167 = tpu.matmul %165, %166, %cst_115 {dimension_numbers = #tpu.dot_dimension_numbers<[1], [0], [0], [1], [0, 0, 1, 1], [], []>} : vector<8x8xbf16>, vector<8x180xbf16>, vector<8x180xf32> -> vector<8x180xf32>
    %168 = arith.addf %163, %167 : vector<8x180xf32>
    %c5_116 = arith.constant 5 : index
    %c0_117 = arith.constant 0 : index
    %c0_118 = arith.constant 0 : index
    %169 = vector.load %arg6[%c5_116, %c0_117, %c0_118] : memref<9x8x8xbf16, #tpu.memory_space<vmem>>, vector<1x8x8xbf16>
    %170 = vector.shape_cast %169 : vector<1x8x8xbf16> to vector<8x8xbf16>
    %c0_119 = arith.constant 0 : index
    %c12_120 = arith.constant 12 : index
    %171 = vector.load %arg10[%c0_119, %c12_120] : memref<8x256xbf16, #tpu.memory_space<vmem>>, vector<8x180xbf16>
    %cst_121 = arith.constant dense<0.000000e+00> : vector<8x180xf32>
    %172 = tpu.matmul %170, %171, %cst_121 {dimension_numbers = #tpu.dot_dimension_numbers<[1], [0], [0], [1], [0, 0, 1, 1], [], []>} : vector<8x8xbf16>, vector<8x180xbf16>, vector<8x180xf32> -> vector<8x180xf32>
    %173 = arith.addf %168, %172 : vector<8x180xf32>
    %c6_122 = arith.constant 6 : index
    %c0_123 = arith.constant 0 : index
    %c0_124 = arith.constant 0 : index
    %174 = vector.load %arg6[%c6_122, %c0_123, %c0_124] : memref<9x8x8xbf16, #tpu.memory_space<vmem>>, vector<1x8x8xbf16>
    %175 = vector.shape_cast %174 : vector<1x8x8xbf16> to vector<8x8xbf16>
    %c0_125 = arith.constant 0 : index
    %c20_126 = arith.constant 20 : index
    %176 = vector.load %arg10[%c0_125, %c20_126] : memref<8x256xbf16, #tpu.memory_space<vmem>>, vector<8x180xbf16>
    %cst_127 = arith.constant dense<0.000000e+00> : vector<8x180xf32>
    %177 = tpu.matmul %175, %176, %cst_127 {dimension_numbers = #tpu.dot_dimension_numbers<[1], [0], [0], [1], [0, 0, 1, 1], [], []>} : vector<8x8xbf16>, vector<8x180xbf16>, vector<8x180xf32> -> vector<8x180xf32>
    %178 = arith.addf %173, %177 : vector<8x180xf32>
    %c7_128 = arith.constant 7 : index
    %c0_129 = arith.constant 0 : index
    %c0_130 = arith.constant 0 : index
    %179 = vector.load %arg6[%c7_128, %c0_129, %c0_130] : memref<9x8x8xbf16, #tpu.memory_space<vmem>>, vector<1x8x8xbf16>
    %180 = vector.shape_cast %179 : vector<1x8x8xbf16> to vector<8x8xbf16>
    %c0_131 = arith.constant 0 : index
    %c21_132 = arith.constant 21 : index
    %181 = vector.load %arg10[%c0_131, %c21_132] : memref<8x256xbf16, #tpu.memory_space<vmem>>, vector<8x180xbf16>
    %cst_133 = arith.constant dense<0.000000e+00> : vector<8x180xf32>
    %182 = tpu.matmul %180, %181, %cst_133 {dimension_numbers = #tpu.dot_dimension_numbers<[1], [0], [0], [1], [0, 0, 1, 1], [], []>} : vector<8x8xbf16>, vector<8x180xbf16>, vector<8x180xf32> -> vector<8x180xf32>
    %183 = arith.addf %178, %182 : vector<8x180xf32>
    %c8_134 = arith.constant 8 : index
    %c0_135 = arith.constant 0 : index
    %c0_136 = arith.constant 0 : index
    %184 = vector.load %arg6[%c8_134, %c0_135, %c0_136] : memref<9x8x8xbf16, #tpu.memory_space<vmem>>, vector<1x8x8xbf16>
    %185 = vector.shape_cast %184 : vector<1x8x8xbf16> to vector<8x8xbf16>
    %c0_137 = arith.constant 0 : index
    %c22_138 = arith.constant 22 : index
    %186 = vector.load %arg10[%c0_137, %c22_138] : memref<8x256xbf16, #tpu.memory_space<vmem>>, vector<8x180xbf16>
    %cst_139 = arith.constant dense<0.000000e+00> : vector<8x180xf32>
    %187 = tpu.matmul %185, %186, %cst_139 {dimension_numbers = #tpu.dot_dimension_numbers<[1], [0], [0], [1], [0, 0, 1, 1], [], []>} : vector<8x8xbf16>, vector<8x180xbf16>, vector<8x180xf32> -> vector<8x180xf32>
    %188 = arith.addf %183, %187 : vector<8x180xf32>
    %c0_140 = arith.constant 0 : index
    %c0_141 = arith.constant 0 : index
    %189 = vector.load %arg7[%c0_140, %c0_141] : memref<8x1xf32, #tpu.memory_space<vmem>>, vector<8x1xf32>
    %190 = vector.broadcast %189 : vector<8x1xf32> to vector<8x180xf32>
    %191 = arith.addf %188, %190 : vector<8x180xf32>
    %cst_142 = arith.constant 0.000000e+00 : f32
    %192 = vector.broadcast %cst_142 : f32 to vector<8x180xf32>
    %193 = arith.maximumf %191, %192 : vector<8x180xf32>
    %c0_143 = arith.constant 0 : index
    %c0_144 = arith.constant 0 : index
    %c0_145 = arith.constant 0 : index
    %194 = vector.load %arg8[%c0_143, %c0_144, %c0_145] : memref<1x8x180xf32, #tpu.memory_space<vmem>>, vector<1x8x180xf32>
    %195 = vector.shape_cast %194 : vector<1x8x180xf32> to vector<8x180xf32>
    %196 = vector.shape_cast %193 : vector<8x180xf32> to vector<1x8x180xf32>
    tpu.vector_store %arg8[%c0_143, %c0_144, %c0_145], %196 {strides = array<i32>} : memref<1x8x180xf32, #tpu.memory_space<vmem>>, vector<1x8x180xf32>,
    return
  }
  func.func @transform_0(%arg0: i32) -> (i32, i32, i32) {
    %c0_i32 = arith.constant 0 : i32
    %c0_i32_0 = arith.constant 0 : i32
    %c0_i32_1 = arith.constant 0 : i32
    return %arg0, %c0_i32, %c0_i32_0 : i32, i32, i32
  }
  func.func @transform_1(%arg0: i32) -> (i32, i32) {
    %c0_i32 = arith.constant 0 : i32
    %c0_i32_0 = arith.constant 0 : i32
    %c0_i32_1 = arith.constant 0 : i32
    return %c0_i32, %c0_i32_0 : i32, i32
  }
  func.func @transform_2(%arg0: i32) -> (i32, i32) {
    %c0_i32 = arith.constant 0 : i32
    %c0_i32_0 = arith.constant 0 : i32
    %c0_i32_1 = arith.constant 0 : i32
    return %c0_i32, %c0_i32_0 : i32, i32
  }
  func.func @transform_3(%arg0: i32) -> (i32, i32, i32) {
    %c0_i32 = arith.constant 0 : i32
    %c0_i32_0 = arith.constant 0 : i32
    %c0_i32_1 = arith.constant 0 : i32
    %c0_i32_2 = arith.constant 0 : i32
    return %c0_i32, %c0_i32_0, %c0_i32_1 : i32, i32, i32
  }
  func.func @transform_4(%arg0: i32) -> (i32, i32) {
    %c0_i32 = arith.constant 0 : i32
    %c0_i32_0 = arith.constant 0 : i32
    %c0_i32_1 = arith.constant 0 : i32
    return %c0_i32, %c0_i32_0 : i32, i32
  }
  func.func @transform_5(%arg0: i32) -> (i32, i32, i32) {
    %c0_i32 = arith.constant 0 : i32
    %c0_i32_0 = arith.constant 0 : i32
    %c0_i32_1 = arith.constant 0 : i32
    %c0_i32_2 = arith.constant 0 : i32
    return %c0_i32, %c0_i32_0, %c0_i32_1 : i32, i32, i32
  }
  func.func @transform_6(%arg0: i32) -> (i32, i32) {
    %c0_i32 = arith.constant 0 : i32
    %c0_i32_0 = arith.constant 0 : i32
    %c0_i32_1 = arith.constant 0 : i32
    return %c0_i32, %c0_i32_0 : i32, i32
  }
  func.func @transform_7(%arg0: i32) -> (i32, i32, i32) {
    %c0_i32 = arith.constant 0 : i32
    %c0_i32_0 = arith.constant 0 : i32
    %c0_i32_1 = arith.constant 0 : i32
    return %arg0, %c0_i32, %c0_i32_0 : i32, i32, i32
  }
}

</mosaic_0001>

<llo_original>
// kernel: tpu_custom_call.1
$region0: #{tpu_custom_call.1}
  #allocation0 [shape = 'u32[]', space=smem, size = 0x4, offset = 0x4, fixed_abs, tag = 'smem constant byte address 0x4 - core index']
  #allocation1 [shape = 'u32[72,128]{1,0:T(1,128)}', space=vmem, size = 0x9000, scoped, tag = 'internal scratch']
  #allocation2 [shape = 'bf16[4,256]{1,0:T(4,128)(2,1)}', space=vmem, size = 0x800, scoped, tag = 'scratch operand']
  #allocation3 [shape = 'bf16[8,256]{1,0:T(8,128)(2,1)}', space=vmem, size = 0x1000, scoped, tag = 'scratch operand']
  %s0 = inlined_call_operand.vmem [shape: f32[2,32,32], index: 0, kind: input, shape index: {}]
  %s1 = inlined_call_operand.vmem [shape: bf16[16,10], index: 1, kind: input, shape index: {}]
  %s2 = inlined_call_operand.vmem [shape: f32[1,180], index: 2, kind: input, shape index: {}]
  %s3 = inlined_call_operand.vmem [shape: bf16[9,8,4], index: 3, kind: input, shape index: {}]
  %s4 = inlined_call_operand.vmem [shape: f32[8,1], index: 4, kind: input, shape index: {}]
  %s5 = inlined_call_operand.vmem [shape: bf16[9,8,8], index: 5, kind: input, shape index: {}]
  %s6 = inlined_call_operand.vmem [shape: f32[8,1], index: 6, kind: input, shape index: {}]
  %s7 = inlined_call_operand.hbm [shape: f32[1,8,180], index: 7, kind: output, shape index: {}]
  %s8 = sld [smem:[#allocation0]]
  $region38: #{tpu_custom_call.1} parent=0
    _
  %s10 = ssub.s32 1, %s8
  %s11 = scalar_select 0, %s10, %s8
  $region1: #{tpu_custom_call.1} parent=0
    #allocation4 [shape = 'u8[8192]{0}', space=vmem, size = 0x2000, scoped, tag = 'output window, operand 0, single buffered']
    #allocation5 [shape = 's32[1]{0}', space=sflag, size = 0x4, scoped, tag = 'scoped memory for tpu_custom_call.1']
    %12 = vsyncpa [#allocation5], 0
    // Predicated region
    $region2: #{tpu_custom_call.1} parent=1 // pred_check
      _
    $region3: #{tpu_custom_call.1} parent=1 // pred_check_branch
      %14 = sbr.rel (0) target = $region5
    $region4: #{tpu_custom_call.1} parent=1 // pred_region
      _
    $region5: #{tpu_custom_call.1} parent=1 // pred_fallthru
      _
    // Predicated region
    $region6: #{tpu_custom_call.1} parent=1 // pred_check
      _
    $region7: #{tpu_custom_call.1} parent=1 // pred_check_branch
      %16 = sbr.rel (0) target = $region9
    $region8: #{tpu_custom_call.1} parent=1 // pred_region
      _
    $region9: #{tpu_custom_call.1} parent=1 // pred_fallthru
      _
    // Predicated region
    $region10: #{tpu_custom_call.1} parent=1 // pred_check
      _
    $region11: #{tpu_custom_call.1} parent=1 // pred_check_branch
      %18 = sbr.rel (0) target = $region13
    $region12: #{tpu_custom_call.1} parent=1 // pred_region
      _
    $region13: #{tpu_custom_call.1} parent=1 // pred_fallthru
      _
    // Predicated region
    $region14: #{tpu_custom_call.1} parent=1 // pred_check
      _
    $region15: #{tpu_custom_call.1} parent=1 // pred_check_branch
      %20 = sbr.rel (0) target = $region17
    $region16: #{tpu_custom_call.1} parent=1 // pred_region
      _
    $region17: #{tpu_custom_call.1} parent=1 // pred_fallthru
      _
    // Predicated region
    $region18: #{tpu_custom_call.1} parent=1 // pred_check
      _
    $region19: #{tpu_custom_call.1} parent=1 // pred_check_branch
      %22 = sbr.rel (0) target = $region21
    $region20: #{tpu_custom_call.1} parent=1 // pred_region
      _
    $region21: #{tpu_custom_call.1} parent=1 // pred_fallthru
      _
    // Predicated region
    $region22: #{tpu_custom_call.1} parent=1 // pred_check
      _
    $region23: #{tpu_custom_call.1} parent=1 // pred_check_branch
      %24 = sbr.rel (0) target = $region25
    $region24: #{tpu_custom_call.1} parent=1 // pred_region
      _
    $region25: #{tpu_custom_call.1} parent=1 // pred_fallthru
      _
    // Predicated region
    $region26: #{tpu_custom_call.1} parent=1 // pred_check
      _
    $region27: #{tpu_custom_call.1} parent=1 // pred_check_branch
      %26 = sbr.rel (0) target = $region29
    $region28: #{tpu_custom_call.1} parent=1 // pred_region
      _
    $region29: #{tpu_custom_call.1} parent=1 // pred_fallthru
      _
    %vm28 = vcmask 74752
    %29 = vst.msk [vmem:[#allocation2] sm:$0x3] %vm28, 0
    %vm30 = vcmask 84992
    %31 = vst.msk [vmem:[#allocation3] sm:$0xf] %vm30, 0
    %vm32 = vcmask 894672
    %33 = vst.msk [vmem:[#allocation2] sm:$0x3] %vm32, 0
    %vm34 = vcmask 1041904
    %35 = vst.msk [vmem:[#allocation2 + $0x2] sm:$0x3] %vm34, 0
    %vm36 = vcmask 1043952
    %37 = vst.msk [vmem:[#allocation3 + $0x4] sm:$0xf] %vm36, 0
    %v38 = vld [vmem:[%s1] sm:$0xf]
    %v39 = vld [vmem:[%s1 + $0x4] sm:$0xf]
    %v40 = vld [vmem:[%s0] sm:$0xff]
    %v41 = vld [vmem:[%s0 + $0x8] sm:$0xff]
    %v42 = vld [vmem:[%s0 + $0x10] sm:$0xff]
    %v43 = vld [vmem:[%s0 + $0x18] sm:$0xff]
    %48 = vrot.lane.b32.xlu0 %v40, 112
    %v49 = vpop.permute.xlu0 %48
    %50 = vrot.lane.b32.xlu0 %v41, 112
    %v51 = vpop.permute.xlu0 %50
    %52 = vrot.lane.b32.xlu0 %v42, 112
    %v53 = vpop.permute.xlu0 %52
    %54 = vrot.lane.b32.xlu0 %v43, 112
    %v55 = vpop.permute.xlu0 %54
    %v60 = vadd.f32 %v40, %v49
    %v61 = vadd.f32 %v41, %v51
    %v62 = vadd.f32 %v42, %v53
    %v63 = vadd.f32 %v43, %v55
    %v64 = vpack.c.bf16 %v61, %v60
    %v65 = vpack.c.bf16 %v63, %v62
    %v68 = vunpack.c.l.b16 %v38
    %v69 = vunpack.c.l.b16 %v39
    %v70 = vpack.c.b16 %v69, %v68
    %vm72 = vcmask 130048
    %v74 = vsel %vm72, %v64, 0
    %v77 = vsel %vm72, %v65, 0
    %79 = vmatpush.bf16.msra.mxu0 0
    %80 = vmatpush.bf16.msra.mxu0 0
    %81 = vmatpush.bf16.msra.mxu0 0
    %82 = vmatpush.bf16.msra.mxu0 0
    %83 = vmatpush.bf16.msra.mxu0 0
    %84 = vmatpush.bf16.msra.mxu0 0
    %85 = vmatpush.bf16.msra.mxu0 0
    %86 = vmatpush.bf16.msra.mxu0 %v70
    %87 = vmatmul.bf16.gmra.mxu0 %v74
    %v88 = vpop.f32.mrf.mxu0
    %v89 = vadd.f32 0.0, %v88
    %v90 = vpop.f32.mrf.mxu0
    %v91 = vadd.f32 0.0, %v90
    %92 = vmatmul.bf16.gmra.mxu0 %v77
    %v93 = vpop.f32.mrf.mxu0
    %v94 = vadd.f32 0.0, %v93
    %v95 = vpop.f32.mrf.mxu0
    %v96 = vadd.f32 0.0, %v95
    %97 = vdwg.mxu0
    %v98 = vpack.c.bf16 %v89, %v89
    %v99 = vpack.c.bf16 %v91, %v91
    %v100 = vpack.c.bf16 %v94, %v94
    %v101 = vpack.c.bf16 %v96, %v96
    %v106 = vrot.slane %v98, 2
    %v107 = vrot.slane %v99, 2
    %v108 = vrot.slane %v100, 2
    %v109 = vrot.slane %v101, 2
    %vm110 = vcmask 1041408
    %v113 = vsel %vm110, %v98, %v106
    %v116 = vsel %vm110, %v99, %v107
    %v119 = vsel %vm110, %v100, %v108
    %v122 = vsel %vm110, %v101, %v109
    %123 = vst [vmem:[#allocation1] ss:$2 sm:$0xff] %v113
    %v124 = vld.sshfl [vmem:[#allocation1] sm:$0xff pattern:$0x75643120]
    %s126 = scalar_lea.vmem [#allocation1], 16
    %127 = vst [vmem:[%s126] ss:$2 sm:$0xff] %v116
    %v128 = vld.sshfl [vmem:[#allocation1 + $0x10] sm:$0xff pattern:$0x75643120]
    %s130 = scalar_lea.vmem [#allocation1], 32
    %131 = vst [vmem:[%s130] ss:$2 sm:$0xff] %v119
    %v132 = vld.sshfl [vmem:[#allocation1 + $0x20] sm:$0xff pattern:$0x75643120]
    %s134 = scalar_lea.vmem [#allocation1], 48
    %135 = vst [vmem:[%s134] ss:$2 sm:$0xff] %v122
    %v136 = vld.sshfl [vmem:[#allocation1 + $0x30] sm:$0xff pattern:$0x75643120]
    %v138 = vunpack.c.l.b16 %v124
    %v139 = vunpack.c.l.b16 %v128
    %v140 = vunpack.c.l.b16 %v132
    %v141 = vunpack.c.l.b16 %v136
    %v142 = vrot.slane %v139, 7
    %vm143 = vcmask 1041409
    %v144 = vsel %vm143, %v142, %v138
    %v145 = vrot.slane %v140, 6
    %vm146 = vcmask 1042434
    %v147 = vsel %vm146, %v145, %v144
    %v148 = vrot.slane %v141, 5
    %vm149 = vcmask 1043459
    %v150 = vsel %vm149, %v148, %v147
    %v151 = vpack.c.b16 %v150, %v150
    %v152 = vrot.slane %v151, 2
    %v155 = vsel %vm110, %v151, %v152
    %157 = vrot.lane.b32.xlu0 %v155, 10
    %v158 = vpop.permute.xlu0 %157
    %vm160 = vcmask 156752
    %161 = vst.msk [vmem:[#allocation2] sm:$0x3] %vm160, %v158
    %162 = vst [vmem:[#allocation1] ss:$2 sm:$0xff] %v113
    %v163 = vld.sshfl [vmem:[#allocation1] sm:$0xff pattern:$0x75643120]
    %s165 = scalar_lea.vmem [#allocation1], 16
    %166 = vst [vmem:[%s165] ss:$2 sm:$0xff] %v116
    %v167 = vld.sshfl [vmem:[#allocation1 + $0x10] sm:$0xff pattern:$0x75643120]
    %s169 = scalar_lea.vmem [#allocation1], 32
    %170 = vst [vmem:[%s169] ss:$2 sm:$0xff] %v119
    %v171 = vld.sshfl [vmem:[#allocation1 + $0x20] sm:$0xff pattern:$0x75643120]
    %s173 = scalar_lea.vmem [#allocation1], 48
    %174 = vst [vmem:[%s173] ss:$2 sm:$0xff] %v122
    %v175 = vld.sshfl [vmem:[#allocation1 + $0x30] sm:$0xff pattern:$0x75643120]
    %v177 = vunpack.c.l.b16 %v163
    %v178 = vunpack.c.l.b16 %v167
    %v179 = vunpack.c.l.b16 %v171
    %v180 = vunpack.c.l.b16 %v175
    %v181 = vrot.slane %v177, 1
    %v182 = vsel %vm143, %v178, %v181
    %v183 = vrot.slane %v179, 7
    %v184 = vsel %vm146, %v183, %v182
    %v185 = vrot.slane %v180, 6
    %v186 = vsel %vm149, %v185, %v184
    %v187 = vpack.c.b16 %v186, %v186
    %v188 = vrot.slane %v187, 2
    %v191 = vsel %vm110, %v187, %v188
    %193 = vrot.lane.b32.xlu0 %v191, 20
    %v194 = vpop.permute.xlu0 %193
    %vm196 = vcmask 238752
    %197 = vst.msk [vmem:[#allocation2] sm:$0x3] %vm196, %v194
    %198 = vst [vmem:[#allocation1] ss:$2 sm:$0xff] %v113
    %v199 = vld.sshfl [vmem:[#allocation1] sm:$0xff pattern:$0x75643120]
    %s201 = scalar_lea.vmem [#allocation1], 16
    %202 = vst [vmem:[%s201] ss:$2 sm:$0xff] %v116
    %v203 = vld.sshfl [vmem:[#allocation1 + $0x10] sm:$0xff pattern:$0x75643120]
    %s205 = scalar_lea.vmem [#allocation1], 32
    %206 = vst [vmem:[%s205] ss:$2 sm:$0xff] %v119
    %v207 = vld.sshfl [vmem:[#allocation1 + $0x20] sm:$0xff pattern:$0x75643120]
    %s209 = scalar_lea.vmem [#allocation1], 48
    %210 = vst [vmem:[%s209] ss:$2 sm:$0xff] %v122
    %v211 = vld.sshfl [vmem:[#allocation1 + $0x30] sm:$0xff pattern:$0x75643120]
    %v213 = vunpack.c.l.b16 %v199
    %v214 = vunpack.c.l.b16 %v203
    %v215 = vunpack.c.l.b16 %v207
    %v216 = vunpack.c.l.b16 %v211
    %v217 = vrot.slane %v213, 2
    %v218 = vrot.slane %v214, 1
    %v219 = vsel %vm143, %v218, %v217
    %v220 = vsel %vm146, %v215, %v219
    %v221 = vrot.slane %v216, 7
    %v222 = vsel %vm149, %v221, %v220
    %v223 = vpack.c.b16 %v222, %v222
    %v224 = vrot.slane %v223, 2
    %v227 = vsel %vm110, %v223, %v224
    %229 = vrot.lane.b32.xlu0 %v227, 30
    %v230 = vpop.permute.xlu0 %229
    %vm232 = vcmask 320752
    %233 = vst.msk [vmem:[#allocation2] sm:$0x3] %vm232, %v230
    %234 = vst [vmem:[#allocation1] ss:$2 sm:$0xff] %v113
    %v235 = vld.sshfl [vmem:[#allocation1] sm:$0xff pattern:$0x75643120]
    %s237 = scalar_lea.vmem [#allocation1], 16
    %238 = vst [vmem:[%s237] ss:$2 sm:$0xff] %v116
    %v239 = vld.sshfl [vmem:[#allocation1 + $0x10] sm:$0xff pattern:$0x75643120]
    %s241 = scalar_lea.vmem [#allocation1], 32
    %242 = vst [vmem:[%s241] ss:$2 sm:$0xff] %v119
    %v243 = vld.sshfl [vmem:[#allocation1 + $0x20] sm:$0xff pattern:$0x75643120]
    %s245 = scalar_lea.vmem [#allocation1], 48
    %246 = vst [vmem:[%s245] ss:$2 sm:$0xff] %v122
    %v247 = vld.sshfl [vmem:[#allocation1 + $0x30] sm:$0xff pattern:$0x75643120]
    %v249 = vunpack.c.l.b16 %v235
    %v250 = vunpack.c.l.b16 %v239
    %v251 = vunpack.c.l.b16 %v243
    %v252 = vunpack.c.l.b16 %v247
    %v253 = vrot.slane %v249, 3
    %v254 = vrot.slane %v250, 2
    %v255 = vsel %vm143, %v254, %v253
    %v256 = vrot.slane %v251, 1
    %v257 = vsel %vm146, %v256, %v255
    %v258 = vsel %vm149, %v252, %v257
    %v259 = vpack.c.b16 %v258, %v258
    %v260 = vrot.slane %v259, 2
    %v263 = vsel %vm110, %v259, %v260
    %265 = vrot.lane.b32.xlu0 %v263, 40
    %v266 = vpop.permute.xlu0 %265
    %vm268 = vcmask 402752
    %269 = vst.msk [vmem:[#allocation2] sm:$0x3] %vm268, %v266
    %270 = vst.sshfl [vmem:[#allocation1] sm:$0xff pattern:$0x75643120] %v98
    %s271 = scalar_lea.vmem [#allocation1], 1
    %v272 = vld [vmem:[%s271] ss:$2 sm:$0xff]
    %273 = vst.sshfl [vmem:[#allocation1 + $0x10] sm:$0xff pattern:$0x75643120] %v99
    %s274 = scalar_lea.vmem [#allocation1], 17
    %v275 = vld [vmem:[%s274] ss:$2 sm:$0xff]
    %276 = vst.sshfl [vmem:[#allocation1 + $0x20] sm:$0xff pattern:$0x75643120] %v100
    %s277 = scalar_lea.vmem [#allocation1], 33
    %v278 = vld [vmem:[%s277] ss:$2 sm:$0xff]
    %279 = vst.sshfl [vmem:[#allocation1 + $0x30] sm:$0xff pattern:$0x75643120] %v101
    %s280 = scalar_lea.vmem [#allocation1], 49
    %v281 = vld [vmem:[%s280] ss:$2 sm:$0xff]
    %282 = vst [vmem:[#allocation1] ss:$2 sm:$0xff] %v272
    %v283 = vld.sshfl [vmem:[#allocation1] sm:$0xff pattern:$0x75643120]
    %s285 = scalar_lea.vmem [#allocation1], 16
    %286 = vst [vmem:[%s285] ss:$2 sm:$0xff] %v275
    %v287 = vld.sshfl [vmem:[#allocation1 + $0x10] sm:$0xff pattern:$0x75643120]
    %s289 = scalar_lea.vmem [#allocation1], 32
    %290 = vst [vmem:[%s289] ss:$2 sm:$0xff] %v278
    %v291 = vld.sshfl [vmem:[#allocation1 + $0x20] sm:$0xff pattern:$0x75643120]
    %s293 = scalar_lea.vmem [#allocation1], 48
    %294 = vst [vmem:[%s293] ss:$2 sm:$0xff] %v281
    %v295 = vld.sshfl [vmem:[#allocation1 + $0x30] sm:$0xff pattern:$0x75643120]
    %v297 = vunpack.c.l.b16 %v283
    %v298 = vunpack.c.l.b16 %v287
    %v299 = vunpack.c.l.b16 %v291
    %v300 = vunpack.c.l.b16 %v295
    %v301 = vrot.slane %v298, 7
    %v302 = vsel %vm143, %v301, %v297
    %v303 = vrot.slane %v299, 6
    %v304 = vsel %vm146, %v303, %v302
    %v305 = vrot.slane %v300, 5
    %v306 = vsel %vm149, %v305, %v304
    %v307 = vpack.c.b16 %v306, %v306
    %v308 = vrot.slane %v307, 2
    %v311 = vsel %vm110, %v307, %v308
    %313 = vrot.lane.b32.xlu0 %v311, 50
    %v314 = vpop.permute.xlu0 %313
    %vm316 = vcmask 484752
    %317 = vst.msk [vmem:[#allocation2] sm:$0x3] %vm316, %v314
    %318 = vst.sshfl [vmem:[#allocation1] sm:$0xff pattern:$0x75643120] %v98
    %s319 = scalar_lea.vmem [#allocation1], 1
    %v320 = vld [vmem:[%s319] ss:$2 sm:$0xff]
    %321 = vst.sshfl [vmem:[#allocation1 + $0x10] sm:$0xff pattern:$0x75643120] %v99
    %s322 = scalar_lea.vmem [#allocation1], 17
    %v323 = vld [vmem:[%s322] ss:$2 sm:$0xff]
    %324 = vst.sshfl [vmem:[#allocation1 + $0x20] sm:$0xff pattern:$0x75643120] %v100
    %s325 = scalar_lea.vmem [#allocation1], 33
    %v326 = vld [vmem:[%s325] ss:$2 sm:$0xff]
    %327 = vst.sshfl [vmem:[#allocation1 + $0x30] sm:$0xff pattern:$0x75643120] %v101
    %s328 = scalar_lea.vmem [#allocation1], 49
    %v329 = vld [vmem:[%s328] ss:$2 sm:$0xff]
    %330 = vst [vmem:[#allocation1] ss:$2 sm:$0xff] %v320
    %v331 = vld.sshfl [vmem:[#allocation1] sm:$0xff pattern:$0x75643120]
    %s333 = scalar_lea.vmem [#allocation1], 16
    %334 = vst [vmem:[%s333] ss:$2 sm:$0xff] %v323
    %v335 = vld.sshfl [vmem:[#allocation1 + $0x10] sm:$0xff pattern:$0x75643120]
    %s337 = scalar_lea.vmem [#allocation1], 32
    %338 = vst [vmem:[%s337] ss:$2 sm:$0xff] %v326
    %v339 = vld.sshfl [vmem:[#allocation1 + $0x20] sm:$0xff pattern:$0x75643120]
    %s341 = scalar_lea.vmem [#allocation1], 48
    %342 = vst [vmem:[%s341] ss:$2 sm:$0xff] %v329
    %v343 = vld.sshfl [vmem:[#allocation1 + $0x30] sm:$0xff pattern:$0x75643120]
    %v345 = vunpack.c.l.b16 %v331
    %v346 = vunpack.c.l.b16 %v335
    %v347 = vunpack.c.l.b16 %v339
    %v348 = vunpack.c.l.b16 %v343
    %v349 = vrot.slane %v345, 1
    %v350 = vsel %vm143, %v346, %v349
    %v351 = vrot.slane %v347, 7
    %v352 = vsel %vm146, %v351, %v350
    %v353 = vrot.slane %v348, 6
    %v354 = vsel %vm149, %v353, %v352
    %v355 = vpack.c.b16 %v354, %v354
    %v356 = vrot.slane %v355, 2
    %v359 = vsel %vm110, %v355, %v356
    %361 = vrot.lane.b32.xlu0 %v359, 60
    %v362 = vpop.permute.xlu0 %361
    %vm364 = vcmask 566752
    %365 = vst.msk [vmem:[#allocation2] sm:$0x3] %vm364, %v362
    %366 = vst.sshfl [vmem:[#allocation1] sm:$0xff pattern:$0x75643120] %v98
    %s367 = scalar_lea.vmem [#allocation1], 1
    %v368 = vld [vmem:[%s367] ss:$2 sm:$0xff]
    %369 = vst.sshfl [vmem:[#allocation1 + $0x10] sm:$0xff pattern:$0x75643120] %v99
    %s370 = scalar_lea.vmem [#allocation1], 17
    %v371 = vld [vmem:[%s370] ss:$2 sm:$0xff]
    %372 = vst.sshfl [vmem:[#allocation1 + $0x20] sm:$0xff pattern:$0x75643120] %v100
    %s373 = scalar_lea.vmem [#allocation1], 33
    %v374 = vld [vmem:[%s373] ss:$2 sm:$0xff]
    %375 = vst.sshfl [vmem:[#allocation1 + $0x30] sm:$0xff pattern:$0x75643120] %v101
    %s376 = scalar_lea.vmem [#allocation1], 49
    %v377 = vld [vmem:[%s376] ss:$2 sm:$0xff]
    %378 = vst [vmem:[#allocation1] ss:$2 sm:$0xff] %v368
    %v379 = vld.sshfl [vmem:[#allocation1] sm:$0xff pattern:$0x75643120]
    %s381 = scalar_lea.vmem [#allocation1], 16
    %382 = vst [vmem:[%s381] ss:$2 sm:$0xff] %v371
    %v383 = vld.sshfl [vmem:[#allocation1 + $0x10] sm:$0xff pattern:$0x75643120]
    %s385 = scalar_lea.vmem [#allocation1], 32
    %386 = vst [vmem:[%s385] ss:$2 sm:$0xff] %v374
    %v387 = vld.sshfl [vmem:[#allocation1 + $0x20] sm:$0xff pattern:$0x75643120]
    %s389 = scalar_lea.vmem [#allocation1], 48
    %390 = vst [vmem:[%s389] ss:$2 sm:$0xff] %v377
    %v391 = vld.sshfl [vmem:[#allocation1 + $0x30] sm:$0xff pattern:$0x75643120]
    %v393 = vunpack.c.l.b16 %v379
    %v394 = vunpack.c.l.b16 %v383
    %v395 = vunpack.c.l.b16 %v387
    %v396 = vunpack.c.l.b16 %v391
    %v397 = vrot.slane %v393, 2
    %v398 = vrot.slane %v394, 1
    %v399 = vsel %vm143, %v398, %v397
    %v400 = vsel %vm146, %v395, %v399
    %v401 = vrot.slane %v396, 7
    %v402 = vsel %vm149, %v401, %v400
    %v403 = vpack.c.b16 %v402, %v402
    %v404 = vrot.slane %v403, 2
    %v407 = vsel %vm110, %v403, %v404
    %409 = vrot.lane.b32.xlu0 %v407, 70
    %v410 = vpop.permute.xlu0 %409
    %vm412 = vcmask 648752
    %413 = vst.msk [vmem:[#allocation2] sm:$0x3] %vm412, %v410
    %414 = vst.sshfl [vmem:[#allocation1] sm:$0xff pattern:$0x75643120] %v98
    %s415 = scalar_lea.vmem [#allocation1], 1
    %v416 = vld [vmem:[%s415] ss:$2 sm:$0xff]
    %417 = vst.sshfl [vmem:[#allocation1 + $0x10] sm:$0xff pattern:$0x75643120] %v99
    %s418 = scalar_lea.vmem [#allocation1], 17
    %v419 = vld [vmem:[%s418] ss:$2 sm:$0xff]
    %420 = vst.sshfl [vmem:[#allocation1 + $0x20] sm:$0xff pattern:$0x75643120] %v100
    %s421 = scalar_lea.vmem [#allocation1], 33
    %v422 = vld [vmem:[%s421] ss:$2 sm:$0xff]
    %423 = vst.sshfl [vmem:[#allocation1 + $0x30] sm:$0xff pattern:$0x75643120] %v101
    %s424 = scalar_lea.vmem [#allocation1], 49
    %v425 = vld [vmem:[%s424] ss:$2 sm:$0xff]
    %426 = vst [vmem:[#allocation1] ss:$2 sm:$0xff] %v416
    %v427 = vld.sshfl [vmem:[#allocation1] sm:$0xff pattern:$0x75643120]
    %s429 = scalar_lea.vmem [#allocation1], 16
    %430 = vst [vmem:[%s429] ss:$2 sm:$0xff] %v419
    %v431 = vld.sshfl [vmem:[#allocation1 + $0x10] sm:$0xff pattern:$0x75643120]
    %s433 = scalar_lea.vmem [#allocation1], 32
    %434 = vst [vmem:[%s433] ss:$2 sm:$0xff] %v422
    %v435 = vld.sshfl [vmem:[#allocation1 + $0x20] sm:$0xff pattern:$0x75643120]
    %s437 = scalar_lea.vmem [#allocation1], 48
    %438 = vst [vmem:[%s437] ss:$2 sm:$0xff] %v425
    %v439 = vld.sshfl [vmem:[#allocation1 + $0x30] sm:$0xff pattern:$0x75643120]
    %v441 = vunpack.c.l.b16 %v427
    %v442 = vunpack.c.l.b16 %v431
    %v443 = vunpack.c.l.b16 %v435
    %v444 = vunpack.c.l.b16 %v439
    %v445 = vrot.slane %v441, 3
    %v446 = vrot.slane %v442, 2
    %v447 = vsel %vm143, %v446, %v445
    %v448 = vrot.slane %v443, 1
    %v449 = vsel %vm146, %v448, %v447
    %v450 = vsel %vm149, %v444, %v449
    %v451 = vpack.c.b16 %v450, %v450
    %v452 = vrot.slane %v451, 2
    %v455 = vsel %vm110, %v451, %v452
    %457 = vrot.lane.b32.xlu0 %v455, 80
    %v458 = vpop.permute.xlu0 %457
    %vm460 = vcmask 730752
    %461 = vst.msk [vmem:[#allocation2] sm:$0x3] %vm460, %v458
    %s462 = scalar_lea.vmem %s0, 32
    %v463 = vld [vmem:[%s462] sm:$0xff]
    %v464 = vld [vmem:[%s462 + $0x8] sm:$0xff]
    %v465 = vld [vmem:[%s462 + $0x10] sm:$0xff]
    %v466 = vld [vmem:[%s462 + $0x18] sm:$0xff]
    %471 = vrot.lane.b32.xlu0 %v463, 112
    %v472 = vpop.permute.xlu0 %471
    %473 = vrot.lane.b32.xlu0 %v464, 112
    %v474 = vpop.permute.xlu0 %473
    %475 = vrot.lane.b32.xlu0 %v465, 112
    %v476 = vpop.permute.xlu0 %475
    %477 = vrot.lane.b32.xlu0 %v466, 112
    %v478 = vpop.permute.xlu0 %477
    %v483 = vadd.f32 %v463, %v472
    %v484 = vadd.f32 %v464, %v474
    %v485 = vadd.f32 %v465, %v476
    %v486 = vadd.f32 %v466, %v478
    %v487 = vpack.c.bf16 %v484, %v483
    %v488 = vpack.c.bf16 %v486, %v485
    %v490 = vsel %vm72, %v487, 0
    %v493 = vsel %vm72, %v488, 0
    %495 = vmatpush.bf16.msra.mxu0 0
    %496 = vmatpush.bf16.msra.mxu0 0
    %497 = vmatpush.bf16.msra.mxu0 0
    %498 = vmatpush.bf16.msra.mxu0 0
    %499 = vmatpush.bf16.msra.mxu0 0
    %500 = vmatpush.bf16.msra.mxu0 0
    %501 = vmatpush.bf16.msra.mxu0 0
    %502 = vmatpush.bf16.msra.mxu0 %v70
    %503 = vmatmul.bf16.gmra.mxu0 %v490
    %v504 = vpop.f32.mrf.mxu0
    %v505 = vadd.f32 0.0, %v504
    %v506 = vpop.f32.mrf.mxu0
    %v507 = vadd.f32 0.0, %v506
    %508 = vmatmul.bf16.gmra.mxu0 %v493
    %v509 = vpop.f32.mrf.mxu0
    %v510 = vadd.f32 0.0, %v509
    %v511 = vpop.f32.mrf.mxu0
    %v512 = vadd.f32 0.0, %v511
    %513 = vdwg.mxu0
    %v514 = vpack.c.bf16 %v505, %v505
    %v515 = vpack.c.bf16 %v507, %v507
    %v516 = vpack.c.bf16 %v510, %v510
    %v517 = vpack.c.bf16 %v512, %v512
    %v522 = vrot.slane %v514, 2
    %v523 = vrot.slane %v515, 2
    %v524 = vrot.slane %v516, 2
    %v525 = vrot.slane %v517, 2
    %v528 = vsel %vm110, %v514, %v522
    %v531 = vsel %vm110, %v515, %v523
    %v534 = vsel %vm110, %v516, %v524
    %v537 = vsel %vm110, %v517, %v525
    %538 = vst [vmem:[#allocation1] ss:$2 sm:$0xff] %v528
    %v539 = vld.sshfl [vmem:[#allocation1] sm:$0xff pattern:$0x75643120]
    %s541 = scalar_lea.vmem [#allocation1], 16
    %542 = vst [vmem:[%s541] ss:$2 sm:$0xff] %v531
    %v543 = vld.sshfl [vmem:[#allocation1 + $0x10] sm:$0xff pattern:$0x75643120]
    %s545 = scalar_lea.vmem [#allocation1], 32
    %546 = vst [vmem:[%s545] ss:$2 sm:$0xff] %v534
    %v547 = vld.sshfl [vmem:[#allocation1 + $0x20] sm:$0xff pattern:$0x75643120]
    %s549 = scalar_lea.vmem [#allocation1], 48
    %550 = vst [vmem:[%s549] ss:$2 sm:$0xff] %v537
    %v551 = vld.sshfl [vmem:[#allocation1 + $0x30] sm:$0xff pattern:$0x75643120]
    %v553 = vunpack.c.l.b16 %v539
    %v554 = vunpack.c.l.b16 %v543
    %v555 = vunpack.c.l.b16 %v547
    %v556 = vunpack.c.l.b16 %v551
    %v557 = vrot.slane %v554, 7
    %v558 = vsel %vm143, %v557, %v553
    %v559 = vrot.slane %v555, 6
    %v560 = vsel %vm146, %v559, %v558
    %v561 = vrot.slane %v556, 5
    %v562 = vsel %vm149, %v561, %v560
    %v563 = vpack.c.b16 %v562, %v562
    %v564 = vrot.slane %v563, 2
    %v567 = vsel %vm110, %v563, %v564
    %569 = vrot.lane.b32.xlu0 %v567, 110
    %v570 = vpop.permute.xlu0 %569
    %vm572 = vcmask 976752
    %573 = vst.msk [vmem:[#allocation2] sm:$0x3] %vm572, %v570
    %574 = vst [vmem:[#allocation1] ss:$2 sm:$0xff] %v528
    %v575 = vld.sshfl [vmem:[#allocation1] sm:$0xff pattern:$0x75643120]
    %s577 = scalar_lea.vmem [#allocation1], 16
    %578 = vst [vmem:[%s577] ss:$2 sm:$0xff] %v531
    %v579 = vld.sshfl [vmem:[#allocation1 + $0x10] sm:$0xff pattern:$0x75643120]
    %s581 = scalar_lea.vmem [#allocation1], 32
    %582 = vst [vmem:[%s581] ss:$2 sm:$0xff] %v534
    %v583 = vld.sshfl [vmem:[#allocation1 + $0x20] sm:$0xff pattern:$0x75643120]
    %s585 = scalar_lea.vmem [#allocation1], 48
    %586 = vst [vmem:[%s585] ss:$2 sm:$0xff] %v537
    %v587 = vld.sshfl [vmem:[#allocation1 + $0x30] sm:$0xff pattern:$0x75643120]
    %v589 = vunpack.c.l.b16 %v575
    %v590 = vunpack.c.l.b16 %v579
    %v591 = vunpack.c.l.b16 %v583
    %v592 = vunpack.c.l.b16 %v587
    %v593 = vrot.slane %v589, 1
    %v594 = vsel %vm143, %v590, %v593
    %v595 = vrot.slane %v591, 7
    %v596 = vsel %vm146, %v595, %v594
    %v597 = vrot.slane %v592, 6
    %v598 = vsel %vm149, %v597, %v596
    %v599 = vpack.c.b16 %v598, %v598
    %v600 = vrot.slane %v599, 2
    %v603 = vsel %vm110, %v599, %v600
    %605 = vrot.lane.b32.xlu0 %v603, 120
    %v606 = vpop.permute.xlu0 %605
    %v607 = vrot.slane %v606, 6
    %vm608 = vcmask 982016
    %v609 = vsel %vm608, %v607, %v606
    %vm611 = vcmask 1042368
    %vm612 = vcmask 11266
    %vm613 = vmor %vm612, %vm611
    %614 = vst.msk [vmem:[#allocation2] sm:$0xf] %vm613, %v609
    %615 = vst [vmem:[#allocation1] ss:$2 sm:$0xff] %v528
    %v616 = vld.sshfl [vmem:[#allocation1] sm:$0xff pattern:$0x75643120]
    %s618 = scalar_lea.vmem [#allocation1], 16
    %619 = vst [vmem:[%s618] ss:$2 sm:$0xff] %v531
    %v620 = vld.sshfl [vmem:[#allocation1 + $0x10] sm:$0xff pattern:$0x75643120]
    %s622 = scalar_lea.vmem [#allocation1], 32
    %623 = vst [vmem:[%s622] ss:$2 sm:$0xff] %v534
    %v624 = vld.sshfl [vmem:[#allocation1 + $0x20] sm:$0xff pattern:$0x75643120]
    %s626 = scalar_lea.vmem [#allocation1], 48
    %627 = vst [vmem:[%s626] ss:$2 sm:$0xff] %v537
    %v628 = vld.sshfl [vmem:[#allocation1 + $0x30] sm:$0xff pattern:$0x75643120]
    %v630 = vunpack.c.l.b16 %v616
    %v631 = vunpack.c.l.b16 %v620
    %v632 = vunpack.c.l.b16 %v624
    %v633 = vunpack.c.l.b16 %v628
    %v634 = vrot.slane %v630, 2
    %v635 = vrot.slane %v631, 1
    %v636 = vsel %vm143, %v635, %v634
    %v637 = vsel %vm146, %v632, %v636
    %v638 = vrot.slane %v633, 7
    %v639 = vsel %vm149, %v638, %v637
    %v640 = vpack.c.b16 %v639, %v639
    %v641 = vrot.slane %v640, 2
    %v644 = vsel %vm110, %v640, %v641
    %646 = vrot.lane.b32.xlu0 %v644, 2
    %v647 = vpop.permute.xlu0 %646
    %vm649 = vcmask 91152
    %650 = vst.msk [vmem:[#allocation2 + $0x2] sm:$0x3] %vm649, %v647
    %651 = vst [vmem:[#allocation1] ss:$2 sm:$0xff] %v528
    %v652 = vld.sshfl [vmem:[#allocation1] sm:$0xff pattern:$0x75643120]
    %s654 = scalar_lea.vmem [#allocation1], 16
    %655 = vst [vmem:[%s654] ss:$2 sm:$0xff] %v531
    %v656 = vld.sshfl [vmem:[#allocation1 + $0x10] sm:$0xff pattern:$0x75643120]
    %s658 = scalar_lea.vmem [#allocation1], 32
    %659 = vst [vmem:[%s658] ss:$2 sm:$0xff] %v534
    %v660 = vld.sshfl [vmem:[#allocation1 + $0x20] sm:$0xff pattern:$0x75643120]
    %s662 = scalar_lea.vmem [#allocation1], 48
    %663 = vst [vmem:[%s662] ss:$2 sm:$0xff] %v537
    %v664 = vld.sshfl [vmem:[#allocation1 + $0x30] sm:$0xff pattern:$0x75643120]
    %v666 = vunpack.c.l.b16 %v652
    %v667 = vunpack.c.l.b16 %v656
    %v668 = vunpack.c.l.b16 %v660
    %v669 = vunpack.c.l.b16 %v664
    %v670 = vrot.slane %v666, 3
    %v671 = vrot.slane %v667, 2
    %v672 = vsel %vm143, %v671, %v670
    %v673 = vrot.slane %v668, 1
    %v674 = vsel %vm146, %v673, %v672
    %v675 = vsel %vm149, %v669, %v674
    %v676 = vpack.c.b16 %v675, %v675
    %v677 = vrot.slane %v676, 2
    %v680 = vsel %vm110, %v676, %v677
    %682 = vrot.lane.b32.xlu0 %v680, 12
    %v683 = vpop.permute.xlu0 %682
    %vm685 = vcmask 173152
    %686 = vst.msk [vmem:[#allocation2 + $0x2] sm:$0x3] %vm685, %v683
    %687 = vst.sshfl [vmem:[#allocation1] sm:$0xff pattern:$0x75643120] %v514
    %s688 = scalar_lea.vmem [#allocation1], 1
    %v689 = vld [vmem:[%s688] ss:$2 sm:$0xff]
    %690 = vst.sshfl [vmem:[#allocation1 + $0x10] sm:$0xff pattern:$0x75643120] %v515
    %s691 = scalar_lea.vmem [#allocation1], 17
    %v692 = vld [vmem:[%s691] ss:$2 sm:$0xff]
    %693 = vst.sshfl [vmem:[#allocation1 + $0x20] sm:$0xff pattern:$0x75643120] %v516
    %s694 = scalar_lea.vmem [#allocation1], 33
    %v695 = vld [vmem:[%s694] ss:$2 sm:$0xff]
    %696 = vst.sshfl [vmem:[#allocation1 + $0x30] sm:$0xff pattern:$0x75643120] %v517
    %s697 = scalar_lea.vmem [#allocation1], 49
    %v698 = vld [vmem:[%s697] ss:$2 sm:$0xff]
    %699 = vst [vmem:[#allocation1] ss:$2 sm:$0xff] %v689
    %v700 = vld.sshfl [vmem:[#allocation1] sm:$0xff pattern:$0x75643120]
    %s702 = scalar_lea.vmem [#allocation1], 16
    %703 = vst [vmem:[%s702] ss:$2 sm:$0xff] %v692
    %v704 = vld.sshfl [vmem:[#allocation1 + $0x10] sm:$0xff pattern:$0x75643120]
    %s706 = scalar_lea.vmem [#allocation1], 32
    %707 = vst [vmem:[%s706] ss:$2 sm:$0xff] %v695
    %v708 = vld.sshfl [vmem:[#allocation1 + $0x20] sm:$0xff pattern:$0x75643120]
    %s710 = scalar_lea.vmem [#allocation1], 48
    %711 = vst [vmem:[%s710] ss:$2 sm:$0xff] %v698
    %v712 = vld.sshfl [vmem:[#allocation1 + $0x30] sm:$0xff pattern:$0x75643120]
    %v714 = vunpack.c.l.b16 %v700
    %v715 = vunpack.c.l.b16 %v704
    %v716 = vunpack.c.l.b16 %v708
    %v717 = vunpack.c.l.b16 %v712
    %v718 = vrot.slane %v715, 7
    %v719 = vsel %vm143, %v718, %v714
    %v720 = vrot.slane %v716, 6
    %v721 = vsel %vm146, %v720, %v719
    %v722 = vrot.slane %v717, 5
    %v723 = vsel %vm149, %v722, %v721
    %v724 = vpack.c.b16 %v723, %v723
    %v725 = vrot.slane %v724, 2
    %v728 = vsel %vm110, %v724, %v725
    %730 = vrot.lane.b32.xlu0 %v728, 22
    %v731 = vpop.permute.xlu0 %730
    %vm733 = vcmask 255152
    %734 = vst.msk [vmem:[#allocation2 + $0x2] sm:$0x3] %vm733, %v731
    %735 = vst.sshfl [vmem:[#allocation1] sm:$0xff pattern:$0x75643120] %v514
    %s736 = scalar_lea.vmem [#allocation1], 1
    %v737 = vld [vmem:[%s736] ss:$2 sm:$0xff]
    %738 = vst.sshfl [vmem:[#allocation1 + $0x10] sm:$0xff pattern:$0x75643120] %v515
    %s739 = scalar_lea.vmem [#allocation1], 17
    %v740 = vld [vmem:[%s739] ss:$2 sm:$0xff]
    %741 = vst.sshfl [vmem:[#allocation1 + $0x20] sm:$0xff pattern:$0x75643120] %v516
    %s742 = scalar_lea.vmem [#allocation1], 33
    %v743 = vld [vmem:[%s742] ss:$2 sm:$0xff]
    %744 = vst.sshfl [vmem:[#allocation1 + $0x30] sm:$0xff pattern:$0x75643120] %v517
    %s745 = scalar_lea.vmem [#allocation1], 49
    %v746 = vld [vmem:[%s745] ss:$2 sm:$0xff]
    %747 = vst [vmem:[#allocation1] ss:$2 sm:$0xff] %v737
    %v748 = vld.sshfl [vmem:[#allocation1] sm:$0xff pattern:$0x75643120]
    %s750 = scalar_lea.vmem [#allocation1], 16
    %751 = vst [vmem:[%s750] ss:$2 sm:$0xff] %v740
    %v752 = vld.sshfl [vmem:[#allocation1 + $0x10] sm:$0xff pattern:$0x75643120]
    %s754 = scalar_lea.vmem [#allocation1], 32
    %755 = vst [vmem:[%s754] ss:$2 sm:$0xff] %v743
    %v756 = vld.sshfl [vmem:[#allocation1 + $0x20] sm:$0xff pattern:$0x75643120]
    %s758 = scalar_lea.vmem [#allocation1], 48
    %759 = vst [vmem:[%s758] ss:$2 sm:$0xff] %v746
    %v760 = vld.sshfl [vmem:[#allocation1 + $0x30] sm:$0xff pattern:$0x75643120]
    %v762 = vunpack.c.l.b16 %v748
    %v763 = vunpack.c.l.b16 %v752
    %v764 = vunpack.c.l.b16 %v756
    %v765 = vunpack.c.l.b16 %v760
    %v766 = vrot.slane %v762, 1
    %v767 = vsel %vm143, %v763, %v766
    %v768 = vrot.slane %v764, 7
    %v769 = vsel %vm146, %v768, %v767
    %v770 = vrot.slane %v765, 6
    %v771 = vsel %vm149, %v770, %v769
    %v772 = vpack.c.b16 %v771, %v771
    %v773 = vrot.slane %v772, 2
    %v776 = vsel %vm110, %v772, %v773
    %778 = vrot.lane.b32.xlu0 %v776, 32
    %v779 = vpop.permute.xlu0 %778
    %vm781 = vcmask 337152
    %782 = vst.msk [vmem:[#allocation2 + $0x2] sm:$0x3] %vm781, %v779
    %783 = vst.sshfl [vmem:[#allocation1] sm:$0xff pattern:$0x75643120] %v514
    %s784 = scalar_lea.vmem [#allocation1], 1
    %v785 = vld [vmem:[%s784] ss:$2 sm:$0xff]
    %786 = vst.sshfl [vmem:[#allocation1 + $0x10] sm:$0xff pattern:$0x75643120] %v515
    %s787 = scalar_lea.vmem [#allocation1], 17
    %v788 = vld [vmem:[%s787] ss:$2 sm:$0xff]
    %789 = vst.sshfl [vmem:[#allocation1 + $0x20] sm:$0xff pattern:$0x75643120] %v516
    %s790 = scalar_lea.vmem [#allocation1], 33
    %v791 = vld [vmem:[%s790] ss:$2 sm:$0xff]
    %792 = vst.sshfl [vmem:[#allocation1 + $0x30] sm:$0xff pattern:$0x75643120] %v517
    %s793 = scalar_lea.vmem [#allocation1], 49
    %v794 = vld [vmem:[%s793] ss:$2 sm:$0xff]
    %795 = vst [vmem:[#allocation1] ss:$2 sm:$0xff] %v785
    %v796 = vld.sshfl [vmem:[#allocation1] sm:$0xff pattern:$0x75643120]
    %s798 = scalar_lea.vmem [#allocation1], 16
    %799 = vst [vmem:[%s798] ss:$2 sm:$0xff] %v788
    %v800 = vld.sshfl [vmem:[#allocation1 + $0x10] sm:$0xff pattern:$0x75643120]
    %s802 = scalar_lea.vmem [#allocation1], 32
    %803 = vst [vmem:[%s802] ss:$2 sm:$0xff] %v791
    %v804 = vld.sshfl [vmem:[#allocation1 + $0x20] sm:$0xff pattern:$0x75643120]
    %s806 = scalar_lea.vmem [#allocation1], 48
    %807 = vst [vmem:[%s806] ss:$2 sm:$0xff] %v794
    %v808 = vld.sshfl [vmem:[#allocation1 + $0x30] sm:$0xff pattern:$0x75643120]
    %v810 = vunpack.c.l.b16 %v796
    %v811 = vunpack.c.l.b16 %v800
    %v812 = vunpack.c.l.b16 %v804
    %v813 = vunpack.c.l.b16 %v808
    %v814 = vrot.slane %v810, 2
    %v815 = vrot.slane %v811, 1
    %v816 = vsel %vm143, %v815, %v814
    %v817 = vsel %vm146, %v812, %v816
    %v818 = vrot.slane %v813, 7
    %v819 = vsel %vm149, %v818, %v817
    %v820 = vpack.c.b16 %v819, %v819
    %v821 = vrot.slane %v820, 2
    %v824 = vsel %vm110, %v820, %v821
    %826 = vrot.lane.b32.xlu0 %v824, 42
    %v827 = vpop.permute.xlu0 %826
    %vm829 = vcmask 419152
    %830 = vst.msk [vmem:[#allocation2 + $0x2] sm:$0x3] %vm829, %v827
    %831 = vst.sshfl [vmem:[#allocation1] sm:$0xff pattern:$0x75643120] %v514
    %s832 = scalar_lea.vmem [#allocation1], 1
    %v833 = vld [vmem:[%s832] ss:$2 sm:$0xff]
    %834 = vst.sshfl [vmem:[#allocation1 + $0x10] sm:$0xff pattern:$0x75643120] %v515
    %s835 = scalar_lea.vmem [#allocation1], 17
    %v836 = vld [vmem:[%s835] ss:$2 sm:$0xff]
    %837 = vst.sshfl [vmem:[#allocation1 + $0x20] sm:$0xff pattern:$0x75643120] %v516
    %s838 = scalar_lea.vmem [#allocation1], 33
    %v839 = vld [vmem:[%s838] ss:$2 sm:$0xff]
    %840 = vst.sshfl [vmem:[#allocation1 + $0x30] sm:$0xff pattern:$0x75643120] %v517
    %s841 = scalar_lea.vmem [#allocation1], 49
    %v842 = vld [vmem:[%s841] ss:$2 sm:$0xff]
    %843 = vst [vmem:[#allocation1] ss:$2 sm:$0xff] %v833
    %v844 = vld.sshfl [vmem:[#allocation1] sm:$0xff pattern:$0x75643120]
    %s846 = scalar_lea.vmem [#allocation1], 16
    %847 = vst [vmem:[%s846] ss:$2 sm:$0xff] %v836
    %v848 = vld.sshfl [vmem:[#allocation1 + $0x10] sm:$0xff pattern:$0x75643120]
    %s850 = scalar_lea.vmem [#allocation1], 32
    %851 = vst [vmem:[%s850] ss:$2 sm:$0xff] %v839
    %v852 = vld.sshfl [vmem:[#allocation1 + $0x20] sm:$0xff pattern:$0x75643120]
    %s854 = scalar_lea.vmem [#allocation1], 48
    %855 = vst [vmem:[%s854] ss:$2 sm:$0xff] %v842
    %v856 = vld.sshfl [vmem:[#allocation1 + $0x30] sm:$0xff pattern:$0x75643120]
    %v858 = vunpack.c.l.b16 %v844
    %v859 = vunpack.c.l.b16 %v848
    %v860 = vunpack.c.l.b16 %v852
    %v861 = vunpack.c.l.b16 %v856
    %v862 = vrot.slane %v858, 3
    %v863 = vrot.slane %v859, 2
    %v864 = vsel %vm143, %v863, %v862
    %v865 = vrot.slane %v860, 1
    %v866 = vsel %vm146, %v865, %v864
    %v867 = vsel %vm149, %v861, %v866
    %v868 = vpack.c.b16 %v867, %v867
    %v869 = vrot.slane %v868, 2
    %v872 = vsel %vm110, %v868, %v869
    %874 = vrot.lane.b32.xlu0 %v872, 52
    %v875 = vpop.permute.xlu0 %874
    %vm877 = vcmask 501152
    %878 = vst.msk [vmem:[#allocation2 + $0x2] sm:$0x3] %vm877, %v875
    %v879 = vld [vmem:[%s2] sm:$0x3]
    %v880 = vld [vmem:[%s3] sm:$0xf]
    %v881 = vld [vmem:[#allocation2] sm:$0xf]
    %s882 = scalar_lea.vmem %s3, 4
    %v883 = vld [vmem:[%s882] sm:$0xf]
    %885 = vst [vmem:[#allocation1] ss:$4 sm:$0xff] %v881
    %v886 = vld.sshfl [vmem:[#allocation1] sm:$0xff pattern:$0x73625140]
    %v888 = vld.sshfl [vmem:[#allocation1 + $0x8] sm:$0xff pattern:$0x73625140]
    %890 = vrot.lane.b32.xlu0 %v886, 127
    %v891 = vpop.permute.xlu0 %890
    %892 = vrot.lane.b32.xlu0 %v888, 127
    %v893 = vpop.permute.xlu0 %892
    %vm894 = vcmask 1039360
    %v895 = vsel %vm894, %v891, %v893
    %vm896 = vcmask 31744
    %v898 = vsel %vm896, %v883, 0
    %v901 = vsel %vm110, %v895, 0
    %v904 = vsel %vm110, %v893, 0
    %906 = vmatpush.bf16.msra.mxu0 0
    %907 = vmatpush.bf16.msra.mxu0 0
    %908 = vmatpush.bf16.msra.mxu0 0
    %909 = vmatpush.bf16.msra.mxu0 0
    %910 = vmatpush.bf16.msra.mxu0 0
    %911 = vmatpush.bf16.msra.mxu0 0
    %912 = vmatpush.bf16.msra.mxu0 0
    %913 = vmatpush.bf16.msra.mxu0 %v901
    %914 = vmatmul.bf16.gmra.mxu0 %v898
    %v915 = vpop.f32.mrf.mxu0
    %v916 = vadd.f32 0.0, %v915
    %v917 = vpop.f32.mrf.mxu0
    %918 = vdwg.mxu0
    %919 = vmatpush.bf16.msra.mxu0 0
    %920 = vmatpush.bf16.msra.mxu0 0
    %921 = vmatpush.bf16.msra.mxu0 0
    %922 = vmatpush.bf16.msra.mxu0 0
    %923 = vmatpush.bf16.msra.mxu0 0
    %924 = vmatpush.bf16.msra.mxu0 0
    %925 = vmatpush.bf16.msra.mxu0 0
    %926 = vmatpush.bf16.msra.mxu0 %v904
    %927 = vmatmul.bf16.gmra.mxu0 %v898
    %v928 = vpop.f32.mrf.mxu0
    %v929 = vadd.f32 0.0, %v928
    %v930 = vpop.f32.mrf.mxu0
    %931 = vdwg.mxu0
    %932 = vst [vmem:[#allocation1] ss:$4 sm:$0xff] %v881
    %v933 = vld.sshfl [vmem:[#allocation1] sm:$0xff pattern:$0x73625140]
    %v934 = vld.sshfl [vmem:[#allocation1 + $0x8] sm:$0xff pattern:$0x73625140]
    %v936 = vsel %vm896, %v880, 0
    %v938 = vsel %vm110, %v933, 0
    %v940 = vsel %vm110, %v934, 0
    %942 = vmatpush.bf16.msra.mxu0 0
    %943 = vmatpush.bf16.msra.mxu0 0
    %944 = vmatpush.bf16.msra.mxu0 0
    %945 = vmatpush.bf16.msra.mxu0 0
    %946 = vmatpush.bf16.msra.mxu0 0
    %947 = vmatpush.bf16.msra.mxu0 0
    %948 = vmatpush.bf16.msra.mxu0 0
    %949 = vmatpush.bf16.msra.mxu0 %v938
    %950 = vmatmul.bf16.gmra.mxu0 %v936
    %v951 = vpop.f32.mrf.mxu0
    %v952 = vadd.f32 %v916, %v951
    %v953 = vpop.f32.mrf.mxu0
    %954 = vdwg.mxu0
    %955 = vmatpush.bf16.msra.mxu0 0
    %956 = vmatpush.bf16.msra.mxu0 0
    %957 = vmatpush.bf16.msra.mxu0 0
    %958 = vmatpush.bf16.msra.mxu0 0
    %959 = vmatpush.bf16.msra.mxu0 0
    %960 = vmatpush.bf16.msra.mxu0 0
    %961 = vmatpush.bf16.msra.mxu0 0
    %962 = vmatpush.bf16.msra.mxu0 %v940
    %963 = vmatmul.bf16.gmra.mxu0 %v936
    %v964 = vpop.f32.mrf.mxu0
    %v965 = vadd.f32 %v929, %v964
    %v966 = vpop.f32.mrf.mxu0
    %967 = vdwg.mxu0
    %s968 = scalar_lea.vmem %s3, 8
    %v969 = vld [vmem:[%s968] sm:$0xf]
    %v970 = vld [vmem:[#allocation2] sm:$0xf]
    %972 = vst [vmem:[#allocation1] ss:$4 sm:$0xff] %v970
    %v973 = vld.sshfl [vmem:[#allocation1] sm:$0xff pattern:$0x73625140]
    %v975 = vld.sshfl [vmem:[#allocation1 + $0x8] sm:$0xff pattern:$0x73625140]
    %977 = vrot.lane.b32.xlu0 %v973, 126
    %v978 = vpop.permute.xlu0 %977
    %979 = vrot.lane.b32.xlu0 %v975, 126
    %v980 = vpop.permute.xlu0 %979
    %vm981 = vcmask 1031168
    %v982 = vsel %vm981, %v978, %v980
    %v984 = vsel %vm896, %v969, 0
    %v987 = vsel %vm110, %v982, 0
    %v990 = vsel %vm110, %v980, 0
    %992 = vmatpush.bf16.msra.mxu0 0
    %993 = vmatpush.bf16.msra.mxu0 0
    %994 = vmatpush.bf16.msra.mxu0 0
    %995 = vmatpush.bf16.msra.mxu0 0
    %996 = vmatpush.bf16.msra.mxu0 0
    %997 = vmatpush.bf16.msra.mxu0 0
    %998 = vmatpush.bf16.msra.mxu0 0
    %999 = vmatpush.bf16.msra.mxu0 %v987
    %1000 = vmatmul.bf16.gmra.mxu0 %v984
    %v1001 = vpop.f32.mrf.mxu0
    %v1002 = vadd.f32 0.0, %v1001
    %v1003 = vpop.f32.mrf.mxu0
    %1004 = vdwg.mxu0
    %1005 = vmatpush.bf16.msra.mxu0 0
    %1006 = vmatpush.bf16.msra.mxu0 0
    %1007 = vmatpush.bf16.msra.mxu0 0
    %1008 = vmatpush.bf16.msra.mxu0 0
    %1009 = vmatpush.bf16.msra.mxu0 0
    %1010 = vmatpush.bf16.msra.mxu0 0
    %1011 = vmatpush.bf16.msra.mxu0 0
    %1012 = vmatpush.bf16.msra.mxu0 %v990
    %1013 = vmatmul.bf16.gmra.mxu0 %v984
    %v1014 = vpop.f32.mrf.mxu0
    %v1015 = vadd.f32 0.0, %v1014
    %v1016 = vpop.f32.mrf.mxu0
    %1017 = vdwg.mxu0
    %v1018 = vadd.f32 %v952, %v1002
    %v1019 = vadd.f32 %v965, %v1015
    %s1020 = scalar_lea.vmem %s3, 12
    %v1021 = vld [vmem:[%s1020] sm:$0xf]
    %v1022 = vld [vmem:[#allocation2] sm:$0xf]
    %1024 = vst [vmem:[#allocation1] ss:$4 sm:$0xff] %v1022
    %v1025 = vld.sshfl [vmem:[#allocation1] sm:$0xff pattern:$0x73625140]
    %v1027 = vld.sshfl [vmem:[#allocation1 + $0x8] sm:$0xff pattern:$0x73625140]
    %1029 = vrot.lane.b32.xlu0 %v1025, 118
    %v1030 = vpop.permute.xlu0 %1029
    %1031 = vrot.lane.b32.xlu0 %v1027, 118
    %v1032 = vpop.permute.xlu0 %1031
    %vm1033 = vcmask 965632
    %v1034 = vsel %vm1033, %v1030, %v1032
    %v1036 = vsel %vm896, %v1021, 0
    %v1039 = vsel %vm110, %v1034, 0
    %v1042 = vsel %vm110, %v1032, 0
    %1044 = vmatpush.bf16.msra.mxu0 0
    %1045 = vmatpush.bf16.msra.mxu0 0
    %1046 = vmatpush.bf16.msra.mxu0 0
    %1047 = vmatpush.bf16.msra.mxu0 0
    %1048 = vmatpush.bf16.msra.mxu0 0
    %1049 = vmatpush.bf16.msra.mxu0 0
    %1050 = vmatpush.bf16.msra.mxu0 0
    %1051 = vmatpush.bf16.msra.mxu0 %v1039
    %1052 = vmatmul.bf16.gmra.mxu0 %v1036
    %v1053 = vpop.f32.mrf.mxu0
    %v1054 = vadd.f32 0.0, %v1053
    %v1055 = vpop.f32.mrf.mxu0
    %1056 = vdwg.mxu0
    %1057 = vmatpush.bf16.msra.mxu0 0
    %1058 = vmatpush.bf16.msra.mxu0 0
    %1059 = vmatpush.bf16.msra.mxu0 0
    %1060 = vmatpush.bf16.msra.mxu0 0
    %1061 = vmatpush.bf16.msra.mxu0 0
    %1062 = vmatpush.bf16.msra.mxu0 0
    %1063 = vmatpush.bf16.msra.mxu0 0
    %1064 = vmatpush.bf16.msra.mxu0 %v1042
    %1065 = vmatmul.bf16.gmra.mxu0 %v1036
    %v1066 = vpop.f32.mrf.mxu0
    %v1067 = vadd.f32 0.0, %v1066
    %v1068 = vpop.f32.mrf.mxu0
    %1069 = vdwg.mxu0
    %v1070 = vadd.f32 %v1018, %v1054
    %v1071 = vadd.f32 %v1019, %v1067
    %s1072 = scalar_lea.vmem %s3, 16
    %v1073 = vld [vmem:[%s1072] sm:$0xf]
    %v1074 = vld [vmem:[#allocation2] sm:$0xf]
    %1076 = vst [vmem:[#allocation1] ss:$4 sm:$0xff] %v1074
    %v1077 = vld.sshfl [vmem:[#allocation1] sm:$0xff pattern:$0x73625140]
    %v1079 = vld.sshfl [vmem:[#allocation1 + $0x8] sm:$0xff pattern:$0x73625140]
    %1081 = vrot.lane.b32.xlu0 %v1077, 117
    %v1082 = vpop.permute.xlu0 %1081
    %1083 = vrot.lane.b32.xlu0 %v1079, 117
    %v1084 = vpop.permute.xlu0 %1083
    %vm1085 = vcmask 957440
    %v1086 = vsel %vm1085, %v1082, %v1084
    %v1088 = vsel %vm896, %v1073, 0
    %v1091 = vsel %vm110, %v1086, 0
    %v1094 = vsel %vm110, %v1084, 0
    %1096 = vmatpush.bf16.msra.mxu0 0
    %1097 = vmatpush.bf16.msra.mxu0 0
    %1098 = vmatpush.bf16.msra.mxu0 0
    %1099 = vmatpush.bf16.msra.mxu0 0
    %1100 = vmatpush.bf16.msra.mxu0 0
    %1101 = vmatpush.bf16.msra.mxu0 0
    %1102 = vmatpush.bf16.msra.mxu0 0
    %1103 = vmatpush.bf16.msra.mxu0 %v1091
    %1104 = vmatmul.bf16.gmra.mxu0 %v1088
    %v1105 = vpop.f32.mrf.mxu0
    %v1106 = vadd.f32 0.0, %v1105
    %v1107 = vpop.f32.mrf.mxu0
    %1108 = vdwg.mxu0
    %1109 = vmatpush.bf16.msra.mxu0 0
    %1110 = vmatpush.bf16.msra.mxu0 0
    %1111 = vmatpush.bf16.msra.mxu0 0
    %1112 = vmatpush.bf16.msra.mxu0 0
    %1113 = vmatpush.bf16.msra.mxu0 0
    %1114 = vmatpush.bf16.msra.mxu0 0
    %1115 = vmatpush.bf16.msra.mxu0 0
    %1116 = vmatpush.bf16.msra.mxu0 %v1094
    %1117 = vmatmul.bf16.gmra.mxu0 %v1088
    %v1118 = vpop.f32.mrf.mxu0
    %v1119 = vadd.f32 0.0, %v1118
    %v1120 = vpop.f32.mrf.mxu0
    %1121 = vdwg.mxu0
    %v1122 = vadd.f32 %v1070, %v1106
    %v1123 = vadd.f32 %v1071, %v1119
    %s1124 = scalar_lea.vmem %s3, 20
    %v1125 = vld [vmem:[%s1124] sm:$0xf]
    %v1126 = vld [vmem:[#allocation2] sm:$0xf]
    %1128 = vst [vmem:[#allocation1] ss:$4 sm:$0xff] %v1126
    %v1129 = vld.sshfl [vmem:[#allocation1] sm:$0xff pattern:$0x73625140]
    %v1131 = vld.sshfl [vmem:[#allocation1 + $0x8] sm:$0xff pattern:$0x73625140]
    %1133 = vrot.lane.b32.xlu0 %v1129, 116
    %v1134 = vpop.permute.xlu0 %1133
    %1135 = vrot.lane.b32.xlu0 %v1131, 116
    %v1136 = vpop.permute.xlu0 %1135
    %vm1137 = vcmask 949248
    %v1138 = vsel %vm1137, %v1134, %v1136
    %v1140 = vsel %vm896, %v1125, 0
    %v1143 = vsel %vm110, %v1138, 0
    %v1146 = vsel %vm110, %v1136, 0
    %1148 = vmatpush.bf16.msra.mxu0 0
    %1149 = vmatpush.bf16.msra.mxu0 0
    %1150 = vmatpush.bf16.msra.mxu0 0
    %1151 = vmatpush.bf16.msra.mxu0 0
    %1152 = vmatpush.bf16.msra.mxu0 0
    %1153 = vmatpush.bf16.msra.mxu0 0
    %1154 = vmatpush.bf16.msra.mxu0 0
    %1155 = vmatpush.bf16.msra.mxu0 %v1143
    %1156 = vmatmul.bf16.gmra.mxu0 %v1140
    %v1157 = vpop.f32.mrf.mxu0
    %v1158 = vadd.f32 0.0, %v1157
    %v1159 = vpop.f32.mrf.mxu0
    %1160 = vdwg.mxu0
    %1161 = vmatpush.bf16.msra.mxu0 0
    %1162 = vmatpush.bf16.msra.mxu0 0
    %1163 = vmatpush.bf16.msra.mxu0 0
    %1164 = vmatpush.bf16.msra.mxu0 0
    %1165 = vmatpush.bf16.msra.mxu0 0
    %1166 = vmatpush.bf16.msra.mxu0 0
    %1167 = vmatpush.bf16.msra.mxu0 0
    %1168 = vmatpush.bf16.msra.mxu0 %v1146
    %1169 = vmatmul.bf16.gmra.mxu0 %v1140
    %v1170 = vpop.f32.mrf.mxu0
    %v1171 = vadd.f32 0.0, %v1170
    %v1172 = vpop.f32.mrf.mxu0
    %1173 = vdwg.mxu0
    %v1174 = vadd.f32 %v1122, %v1158
    %v1175 = vadd.f32 %v1123, %v1171
    %s1176 = scalar_lea.vmem %s3, 24
    %v1177 = vld [vmem:[%s1176] sm:$0xf]
    %v1178 = vld [vmem:[#allocation2] sm:$0xf]
    %1180 = vst [vmem:[#allocation1] ss:$4 sm:$0xff] %v1178
    %v1181 = vld.sshfl [vmem:[#allocation1] sm:$0xff pattern:$0x73625140]
    %v1183 = vld.sshfl [vmem:[#allocation1 + $0x8] sm:$0xff pattern:$0x73625140]
    %1185 = vrot.lane.b32.xlu0 %v1181, 108
    %v1186 = vpop.permute.xlu0 %1185
    %1187 = vrot.lane.b32.xlu0 %v1183, 108
    %v1188 = vpop.permute.xlu0 %1187
    %vm1189 = vcmask 883712
    %v1190 = vsel %vm1189, %v1186, %v1188
    %v1192 = vsel %vm896, %v1177, 0
    %v1195 = vsel %vm110, %v1190, 0
    %v1198 = vsel %vm110, %v1188, 0
    %1200 = vmatpush.bf16.msra.mxu0 0
    %1201 = vmatpush.bf16.msra.mxu0 0
    %1202 = vmatpush.bf16.msra.mxu0 0
    %1203 = vmatpush.bf16.msra.mxu0 0
    %1204 = vmatpush.bf16.msra.mxu0 0
    %1205 = vmatpush.bf16.msra.mxu0 0
    %1206 = vmatpush.bf16.msra.mxu0 0
    %1207 = vmatpush.bf16.msra.mxu0 %v1195
    %1208 = vmatmul.bf16.gmra.mxu0 %v1192
    %v1209 = vpop.f32.mrf.mxu0
    %v1210 = vadd.f32 0.0, %v1209
    %v1211 = vpop.f32.mrf.mxu0
    %1212 = vdwg.mxu0
    %1213 = vmatpush.bf16.msra.mxu0 0
    %1214 = vmatpush.bf16.msra.mxu0 0
    %1215 = vmatpush.bf16.msra.mxu0 0
    %1216 = vmatpush.bf16.msra.mxu0 0
    %1217 = vmatpush.bf16.msra.mxu0 0
    %1218 = vmatpush.bf16.msra.mxu0 0
    %1219 = vmatpush.bf16.msra.mxu0 0
    %1220 = vmatpush.bf16.msra.mxu0 %v1198
    %1221 = vmatmul.bf16.gmra.mxu0 %v1192
    %v1222 = vpop.f32.mrf.mxu0
    %v1223 = vadd.f32 0.0, %v1222
    %v1224 = vpop.f32.mrf.mxu0
    %1225 = vdwg.mxu0
    %v1226 = vadd.f32 %v1174, %v1210
    %v1227 = vadd.f32 %v1175, %v1223
    %s1228 = scalar_lea.vmem %s3, 28
    %v1229 = vld [vmem:[%s1228] sm:$0xf]
    %v1230 = vld [vmem:[#allocation2] sm:$0xf]
    %1232 = vst [vmem:[#allocation1] ss:$4 sm:$0xff] %v1230
    %v1233 = vld.sshfl [vmem:[#allocation1] sm:$0xff pattern:$0x73625140]
    %v1235 = vld.sshfl [vmem:[#allocation1 + $0x8] sm:$0xff pattern:$0x73625140]
    %1237 = vrot.lane.b32.xlu0 %v1233, 107
    %v1238 = vpop.permute.xlu0 %1237
    %1239 = vrot.lane.b32.xlu0 %v1235, 107
    %v1240 = vpop.permute.xlu0 %1239
    %vm1241 = vcmask 875520
    %v1242 = vsel %vm1241, %v1238, %v1240
    %v1244 = vsel %vm896, %v1229, 0
    %v1247 = vsel %vm110, %v1242, 0
    %v1250 = vsel %vm110, %v1240, 0
    %1252 = vmatpush.bf16.msra.mxu0 0
    %1253 = vmatpush.bf16.msra.mxu0 0
    %1254 = vmatpush.bf16.msra.mxu0 0
    %1255 = vmatpush.bf16.msra.mxu0 0
    %1256 = vmatpush.bf16.msra.mxu0 0
    %1257 = vmatpush.bf16.msra.mxu0 0
    %1258 = vmatpush.bf16.msra.mxu0 0
    %1259 = vmatpush.bf16.msra.mxu0 %v1247
    %1260 = vmatmul.bf16.gmra.mxu0 %v1244
    %v1261 = vpop.f32.mrf.mxu0
    %v1262 = vadd.f32 0.0, %v1261
    %v1263 = vpop.f32.mrf.mxu0
    %1264 = vdwg.mxu0
    %1265 = vmatpush.bf16.msra.mxu0 0
    %1266 = vmatpush.bf16.msra.mxu0 0
    %1267 = vmatpush.bf16.msra.mxu0 0
    %1268 = vmatpush.bf16.msra.mxu0 0
    %1269 = vmatpush.bf16.msra.mxu0 0
    %1270 = vmatpush.bf16.msra.mxu0 0
    %1271 = vmatpush.bf16.msra.mxu0 0
    %1272 = vmatpush.bf16.msra.mxu0 %v1250
    %1273 = vmatmul.bf16.gmra.mxu0 %v1244
    %v1274 = vpop.f32.mrf.mxu0
    %v1275 = vadd.f32 0.0, %v1274
    %v1276 = vpop.f32.mrf.mxu0
    %1277 = vdwg.mxu0
    %v1278 = vadd.f32 %v1226, %v1262
    %v1279 = vadd.f32 %v1227, %v1275
    %s1280 = scalar_lea.vmem %s3, 32
    %v1281 = vld [vmem:[%s1280] sm:$0xf]
    %v1282 = vld [vmem:[#allocation2] sm:$0xf]
    %1284 = vst [vmem:[#allocation1] ss:$4 sm:$0xff] %v1282
    %v1285 = vld.sshfl [vmem:[#allocation1] sm:$0xff pattern:$0x73625140]
    %v1287 = vld.sshfl [vmem:[#allocation1 + $0x8] sm:$0xff pattern:$0x73625140]
    %1289 = vrot.lane.b32.xlu0 %v1285, 106
    %v1290 = vpop.permute.xlu0 %1289
    %1291 = vrot.lane.b32.xlu0 %v1287, 106
    %v1292 = vpop.permute.xlu0 %1291
    %vm1293 = vcmask 867328
    %v1294 = vsel %vm1293, %v1290, %v1292
    %v1296 = vsel %vm896, %v1281, 0
    %v1299 = vsel %vm110, %v1294, 0
    %v1302 = vsel %vm110, %v1292, 0
    %1304 = vmatpush.bf16.msra.mxu0 0
    %1305 = vmatpush.bf16.msra.mxu0 0
    %1306 = vmatpush.bf16.msra.mxu0 0
    %1307 = vmatpush.bf16.msra.mxu0 0
    %1308 = vmatpush.bf16.msra.mxu0 0
    %1309 = vmatpush.bf16.msra.mxu0 0
    %1310 = vmatpush.bf16.msra.mxu0 0
    %1311 = vmatpush.bf16.msra.mxu0 %v1299
    %1312 = vmatmul.bf16.gmra.mxu0 %v1296
    %v1313 = vpop.f32.mrf.mxu0
    %v1314 = vadd.f32 0.0, %v1313
    %v1315 = vpop.f32.mrf.mxu0
    %1316 = vdwg.mxu0
    %1317 = vmatpush.bf16.msra.mxu0 0
    %1318 = vmatpush.bf16.msra.mxu0 0
    %1319 = vmatpush.bf16.msra.mxu0 0
    %1320 = vmatpush.bf16.msra.mxu0 0
    %1321 = vmatpush.bf16.msra.mxu0 0
    %1322 = vmatpush.bf16.msra.mxu0 0
    %1323 = vmatpush.bf16.msra.mxu0 0
    %1324 = vmatpush.bf16.msra.mxu0 %v1302
    %1325 = vmatmul.bf16.gmra.mxu0 %v1296
    %v1326 = vpop.f32.mrf.mxu0
    %v1327 = vadd.f32 0.0, %v1326
    %v1328 = vpop.f32.mrf.mxu0
    %1329 = vdwg.mxu0
    %v1330 = vadd.f32 %v1278, %v1314
    %v1331 = vadd.f32 %v1279, %v1327
    %v1332 = vld [vmem:[%s4] sm:$0xff]
    %1334 = vset.pattern.permute.xlu0 0
    %1335 = vperm.xlu0 %1334, %v1332
    %v1336 = vpop.permute.xlu0 %1335
    %v1338 = vadd.f32 %v1330, %v1336
    %v1339 = vadd.f32 %v1331, %v1336
    %v1340 = vmax.f32 %v1338, 0.0
    %v1341 = vmax.f32 %v1339, 0.0
    %v1343 = vperm.slane %v879, 0
    %v1344 = vperm.slane %v879, 1
    %v1347 = vmul.f32 %v1340, %v1343
    %v1348 = vmul.f32 %v1341, %v1344
    %v1349 = vpack.c.bf16 %v1348, %v1347
    %1351 = vrot.lane.b32.xlu0 %v1349, 11
    %v1352 = vpop.permute.xlu0 %1351
    %v1353 = vrot.slane %v1352, 4
    %vm1354 = vcmask 89088
    %v1355 = vsel %vm1354, %v1353, %v1352
    %vm1357 = vcmask 1043544
    %vm1358 = vcmask 515076
    %vm1359 = vmor %vm1358, %vm1357
    %1360 = vst.msk [vmem:[#allocation3] sm:$0xff] %vm1359, %v1355
    %v1361 = vld [vmem:[%s5] sm:$0xf]
    %v1362 = vld [vmem:[#allocation3] sm:$0xff]
    %s1363 = scalar_lea.vmem %s5, 4
    %v1364 = vld [vmem:[%s1363] sm:$0xf]
    %v1366 = vunpack.c.l.b16 %v1362
    %v1367 = vunpack.c.h.b16 %v1362
    %v1368 = vpack.c.b16 %v1366, %v1366
    %v1369 = vpack.c.b16 %v1367, %v1367
    %1370 = vrot.lane.b32.xlu0 %v1368, 127
    %v1371 = vpop.permute.xlu0 %1370
    %1372 = vrot.lane.b32.xlu0 %v1369, 127
    %v1373 = vpop.permute.xlu0 %1372
    %v1374 = vsel %vm894, %v1371, %v1373
    %vm1375 = vcmask 64512
    %v1377 = vsel %vm1375, %v1364, 0
    %vm1379 = vcmask 1043456
    %v1381 = vsel %vm1379, %v1374, 0
    %v1384 = vsel %vm1379, %v1373, 0
    %1386 = vmatpush.bf16.msra.mxu0 0
    %1387 = vmatpush.bf16.msra.mxu0 0
    %1388 = vmatpush.bf16.msra.mxu0 0
    %1389 = vmatpush.bf16.msra.mxu0 0
    %1390 = vmatpush.bf16.msra.mxu0 0
    %1391 = vmatpush.bf16.msra.mxu0 0
    %1392 = vmatpush.bf16.msra.mxu0 0
    %1393 = vmatpush.bf16.msra.mxu0 %v1381
    %1394 = vmatmul.bf16.gmra.mxu0 %v1377
    %v1395 = vpop.f32.mrf.mxu0
    %v1396 = vadd.f32 0.0, %v1395
    %v1397 = vpop.f32.mrf.mxu0
    %1398 = vdwg.mxu0
    %1399 = vmatpush.bf16.msra.mxu0 0
    %1400 = vmatpush.bf16.msra.mxu0 0
    %1401 = vmatpush.bf16.msra.mxu0 0
    %1402 = vmatpush.bf16.msra.mxu0 0
    %1403 = vmatpush.bf16.msra.mxu0 0
    %1404 = vmatpush.bf16.msra.mxu0 0
    %1405 = vmatpush.bf16.msra.mxu0 0
    %1406 = vmatpush.bf16.msra.mxu0 %v1384
    %1407 = vmatmul.bf16.gmra.mxu0 %v1377
    %v1408 = vpop.f32.mrf.mxu0
    %v1409 = vadd.f32 0.0, %v1408
    %v1410 = vpop.f32.mrf.mxu0
    %1411 = vdwg.mxu0
    %v1413 = vsel %vm1375, %v1361, 0
    %v1416 = vsel %vm1379, %v1368, 0
    %v1419 = vsel %vm1379, %v1369, 0
    %1421 = vmatpush.bf16.msra.mxu0 0
    %1422 = vmatpush.bf16.msra.mxu0 0
    %1423 = vmatpush.bf16.msra.mxu0 0
    %1424 = vmatpush.bf16.msra.mxu0 0
    %1425 = vmatpush.bf16.msra.mxu0 0
    %1426 = vmatpush.bf16.msra.mxu0 0
    %1427 = vmatpush.bf16.msra.mxu0 0
    %1428 = vmatpush.bf16.msra.mxu0 %v1416
    %1429 = vmatmul.bf16.gmra.mxu0 %v1413
    %v1430 = vpop.f32.mrf.mxu0
    %v1431 = vadd.f32 %v1396, %v1430
    %v1432 = vpop.f32.mrf.mxu0
    %1433 = vdwg.mxu0
    %1434 = vmatpush.bf16.msra.mxu0 0
    %1435 = vmatpush.bf16.msra.mxu0 0
    %1436 = vmatpush.bf16.msra.mxu0 0
    %1437 = vmatpush.bf16.msra.mxu0 0
    %1438 = vmatpush.bf16.msra.mxu0 0
    %1439 = vmatpush.bf16.msra.mxu0 0
    %1440 = vmatpush.bf16.msra.mxu0 0
    %1441 = vmatpush.bf16.msra.mxu0 %v1419
    %1442 = vmatmul.bf16.gmra.mxu0 %v1413
    %v1443 = vpop.f32.mrf.mxu0
    %v1444 = vadd.f32 %v1409, %v1443
    %v1445 = vpop.f32.mrf.mxu0
    %1446 = vdwg.mxu0
    %s1447 = scalar_lea.vmem %s5, 8
    %v1448 = vld [vmem:[%s1447] sm:$0xf]
    %1449 = vrot.lane.b32.xlu0 %v1368, 126
    %v1450 = vpop.permute.xlu0 %1449
    %1451 = vrot.lane.b32.xlu0 %v1369, 126
    %v1452 = vpop.permute.xlu0 %1451
    %v1453 = vsel %vm981, %v1450, %v1452
    %v1455 = vsel %vm1375, %v1448, 0
    %v1458 = vsel %vm1379, %v1453, 0
    %v1461 = vsel %vm1379, %v1452, 0
    %1463 = vmatpush.bf16.msra.mxu0 0
    %1464 = vmatpush.bf16.msra.mxu0 0
    %1465 = vmatpush.bf16.msra.mxu0 0
    %1466 = vmatpush.bf16.msra.mxu0 0
    %1467 = vmatpush.bf16.msra.mxu0 0
    %1468 = vmatpush.bf16.msra.mxu0 0
    %1469 = vmatpush.bf16.msra.mxu0 0
    %1470 = vmatpush.bf16.msra.mxu0 %v1458
    %1471 = vmatmul.bf16.gmra.mxu0 %v1455
    %v1472 = vpop.f32.mrf.mxu0
    %v1473 = vadd.f32 0.0, %v1472
    %v1474 = vpop.f32.mrf.mxu0
    %1475 = vdwg.mxu0
    %1476 = vmatpush.bf16.msra.mxu0 0
    %1477 = vmatpush.bf16.msra.mxu0 0
    %1478 = vmatpush.bf16.msra.mxu0 0
    %1479 = vmatpush.bf16.msra.mxu0 0
    %1480 = vmatpush.bf16.msra.mxu0 0
    %1481 = vmatpush.bf16.msra.mxu0 0
    %1482 = vmatpush.bf16.msra.mxu0 0
    %1483 = vmatpush.bf16.msra.mxu0 %v1461
    %1484 = vmatmul.bf16.gmra.mxu0 %v1455
    %v1485 = vpop.f32.mrf.mxu0
    %v1486 = vadd.f32 0.0, %v1485
    %v1487 = vpop.f32.mrf.mxu0
    %1488 = vdwg.mxu0
    %v1489 = vadd.f32 %v1431, %v1473
    %v1490 = vadd.f32 %v1444, %v1486
    %s1491 = scalar_lea.vmem %s5, 12
    %v1492 = vld [vmem:[%s1491] sm:$0xf]
    %1493 = vrot.lane.b32.xlu0 %v1368, 118
    %v1494 = vpop.permute.xlu0 %1493
    %1495 = vrot.lane.b32.xlu0 %v1369, 118
    %v1496 = vpop.permute.xlu0 %1495
    %v1497 = vsel %vm1033, %v1494, %v1496
    %v1499 = vsel %vm1375, %v1492, 0
    %v1502 = vsel %vm1379, %v1497, 0
    %v1505 = vsel %vm1379, %v1496, 0
    %1507 = vmatpush.bf16.msra.mxu0 0
    %1508 = vmatpush.bf16.msra.mxu0 0
    %1509 = vmatpush.bf16.msra.mxu0 0
    %1510 = vmatpush.bf16.msra.mxu0 0
    %1511 = vmatpush.bf16.msra.mxu0 0
    %1512 = vmatpush.bf16.msra.mxu0 0
    %1513 = vmatpush.bf16.msra.mxu0 0
    %1514 = vmatpush.bf16.msra.mxu0 %v1502
    %1515 = vmatmul.bf16.gmra.mxu0 %v1499
    %v1516 = vpop.f32.mrf.mxu0
    %v1517 = vadd.f32 0.0, %v1516
    %v1518 = vpop.f32.mrf.mxu0
    %1519 = vdwg.mxu0
    %1520 = vmatpush.bf16.msra.mxu0 0
    %1521 = vmatpush.bf16.msra.mxu0 0
    %1522 = vmatpush.bf16.msra.mxu0 0
    %1523 = vmatpush.bf16.msra.mxu0 0
    %1524 = vmatpush.bf16.msra.mxu0 0
    %1525 = vmatpush.bf16.msra.mxu0 0
    %1526 = vmatpush.bf16.msra.mxu0 0
    %1527 = vmatpush.bf16.msra.mxu0 %v1505
    %1528 = vmatmul.bf16.gmra.mxu0 %v1499
    %v1529 = vpop.f32.mrf.mxu0
    %v1530 = vadd.f32 0.0, %v1529
    %v1531 = vpop.f32.mrf.mxu0
    %1532 = vdwg.mxu0
    %v1533 = vadd.f32 %v1489, %v1517
    %v1534 = vadd.f32 %v1490, %v1530
    %s1535 = scalar_lea.vmem %s5, 16
    %v1536 = vld [vmem:[%s1535] sm:$0xf]
    %1537 = vrot.lane.b32.xlu0 %v1368, 117
    %v1538 = vpop.permute.xlu0 %1537
    %1539 = vrot.lane.b32.xlu0 %v1369, 117
    %v1540 = vpop.permute.xlu0 %1539
    %v1541 = vsel %vm1085, %v1538, %v1540
    %v1543 = vsel %vm1375, %v1536, 0
    %v1546 = vsel %vm1379, %v1541, 0
    %v1549 = vsel %vm1379, %v1540, 0
    %1551 = vmatpush.bf16.msra.mxu0 0
    %1552 = vmatpush.bf16.msra.mxu0 0
    %1553 = vmatpush.bf16.msra.mxu0 0
    %1554 = vmatpush.bf16.msra.mxu0 0
    %1555 = vmatpush.bf16.msra.mxu0 0
    %1556 = vmatpush.bf16.msra.mxu0 0
    %1557 = vmatpush.bf16.msra.mxu0 0
    %1558 = vmatpush.bf16.msra.mxu0 %v1546
    %1559 = vmatmul.bf16.gmra.mxu0 %v1543
    %v1560 = vpop.f32.mrf.mxu0
    %v1561 = vadd.f32 0.0, %v1560
    %v1562 = vpop.f32.mrf.mxu0
    %1563 = vdwg.mxu0
    %1564 = vmatpush.bf16.msra.mxu0 0
    %1565 = vmatpush.bf16.msra.mxu0 0
    %1566 = vmatpush.bf16.msra.mxu0 0
    %1567 = vmatpush.bf16.msra.mxu0 0
    %1568 = vmatpush.bf16.msra.mxu0 0
    %1569 = vmatpush.bf16.msra.mxu0 0
    %1570 = vmatpush.bf16.msra.mxu0 0
    %1571 = vmatpush.bf16.msra.mxu0 %v1549
    %1572 = vmatmul.bf16.gmra.mxu0 %v1543
    %v1573 = vpop.f32.mrf.mxu0
    %v1574 = vadd.f32 0.0, %v1573
    %v1575 = vpop.f32.mrf.mxu0
    %1576 = vdwg.mxu0
    %v1577 = vadd.f32 %v1533, %v1561
    %v1578 = vadd.f32 %v1534, %v1574
    %s1579 = scalar_lea.vmem %s5, 20
    %v1580 = vld [vmem:[%s1579] sm:$0xf]
    %1581 = vrot.lane.b32.xlu0 %v1368, 116
    %v1582 = vpop.permute.xlu0 %1581
    %1583 = vrot.lane.b32.xlu0 %v1369, 116
    %v1584 = vpop.permute.xlu0 %1583
    %v1585 = vsel %vm1137, %v1582, %v1584
    %v1587 = vsel %vm1375, %v1580, 0
    %v1590 = vsel %vm1379, %v1585, 0
    %v1593 = vsel %vm1379, %v1584, 0
    %1595 = vmatpush.bf16.msra.mxu0 0
    %1596 = vmatpush.bf16.msra.mxu0 0
    %1597 = vmatpush.bf16.msra.mxu0 0
    %1598 = vmatpush.bf16.msra.mxu0 0
    %1599 = vmatpush.bf16.msra.mxu0 0
    %1600 = vmatpush.bf16.msra.mxu0 0
    %1601 = vmatpush.bf16.msra.mxu0 0
    %1602 = vmatpush.bf16.msra.mxu0 %v1590
    %1603 = vmatmul.bf16.gmra.mxu0 %v1587
    %v1604 = vpop.f32.mrf.mxu0
    %v1605 = vadd.f32 0.0, %v1604
    %v1606 = vpop.f32.mrf.mxu0
    %1607 = vdwg.mxu0
    %1608 = vmatpush.bf16.msra.mxu0 0
    %1609 = vmatpush.bf16.msra.mxu0 0
    %1610 = vmatpush.bf16.msra.mxu0 0
    %1611 = vmatpush.bf16.msra.mxu0 0
    %1612 = vmatpush.bf16.msra.mxu0 0
    %1613 = vmatpush.bf16.msra.mxu0 0
    %1614 = vmatpush.bf16.msra.mxu0 0
    %1615 = vmatpush.bf16.msra.mxu0 %v1593
    %1616 = vmatmul.bf16.gmra.mxu0 %v1587
    %v1617 = vpop.f32.mrf.mxu0
    %v1618 = vadd.f32 0.0, %v1617
    %v1619 = vpop.f32.mrf.mxu0
    %1620 = vdwg.mxu0
    %v1621 = vadd.f32 %v1577, %v1605
    %v1622 = vadd.f32 %v1578, %v1618
    %s1623 = scalar_lea.vmem %s5, 24
    %v1624 = vld [vmem:[%s1623] sm:$0xf]
    %1625 = vrot.lane.b32.xlu0 %v1368, 108
    %v1626 = vpop.permute.xlu0 %1625
    %1627 = vrot.lane.b32.xlu0 %v1369, 108
    %v1628 = vpop.permute.xlu0 %1627
    %v1629 = vsel %vm1189, %v1626, %v1628
    %v1631 = vsel %vm1375, %v1624, 0
    %v1634 = vsel %vm1379, %v1629, 0
    %v1637 = vsel %vm1379, %v1628, 0
    %1639 = vmatpush.bf16.msra.mxu0 0
    %1640 = vmatpush.bf16.msra.mxu0 0
    %1641 = vmatpush.bf16.msra.mxu0 0
    %1642 = vmatpush.bf16.msra.mxu0 0
    %1643 = vmatpush.bf16.msra.mxu0 0
    %1644 = vmatpush.bf16.msra.mxu0 0
    %1645 = vmatpush.bf16.msra.mxu0 0
    %1646 = vmatpush.bf16.msra.mxu0 %v1634
    %1647 = vmatmul.bf16.gmra.mxu0 %v1631
    %v1648 = vpop.f32.mrf.mxu0
    %v1649 = vadd.f32 0.0, %v1648
    %v1650 = vpop.f32.mrf.mxu0
    %1651 = vdwg.mxu0
    %1652 = vmatpush.bf16.msra.mxu0 0
    %1653 = vmatpush.bf16.msra.mxu0 0
    %1654 = vmatpush.bf16.msra.mxu0 0
    %1655 = vmatpush.bf16.msra.mxu0 0
    %1656 = vmatpush.bf16.msra.mxu0 0
    %1657 = vmatpush.bf16.msra.mxu0 0
    %1658 = vmatpush.bf16.msra.mxu0 0
    %1659 = vmatpush.bf16.msra.mxu0 %v1637
    %1660 = vmatmul.bf16.gmra.mxu0 %v1631
    %v1661 = vpop.f32.mrf.mxu0
    %v1662 = vadd.f32 0.0, %v1661
    %v1663 = vpop.f32.mrf.mxu0
    %1664 = vdwg.mxu0
    %v1665 = vadd.f32 %v1621, %v1649
    %v1666 = vadd.f32 %v1622, %v1662
    %s1667 = scalar_lea.vmem %s5, 28
    %v1668 = vld [vmem:[%s1667] sm:$0xf]
    %1669 = vrot.lane.b32.xlu0 %v1368, 107
    %v1670 = vpop.permute.xlu0 %1669
    %1671 = vrot.lane.b32.xlu0 %v1369, 107
    %v1672 = vpop.permute.xlu0 %1671
    %v1673 = vsel %vm1241, %v1670, %v1672
    %v1675 = vsel %vm1375, %v1668, 0
    %v1678 = vsel %vm1379, %v1673, 0
    %v1681 = vsel %vm1379, %v1672, 0
    %1683 = vmatpush.bf16.msra.mxu0 0
    %1684 = vmatpush.bf16.msra.mxu0 0
    %1685 = vmatpush.bf16.msra.mxu0 0
    %1686 = vmatpush.bf16.msra.mxu0 0
    %1687 = vmatpush.bf16.msra.mxu0 0
    %1688 = vmatpush.bf16.msra.mxu0 0
    %1689 = vmatpush.bf16.msra.mxu0 0
    %1690 = vmatpush.bf16.msra.mxu0 %v1678
    %1691 = vmatmul.bf16.gmra.mxu0 %v1675
    %v1692 = vpop.f32.mrf.mxu0
    %v1693 = vadd.f32 0.0, %v1692
    %v1694 = vpop.f32.mrf.mxu0
    %1695 = vdwg.mxu0
    %1696 = vmatpush.bf16.msra.mxu0 0
    %1697 = vmatpush.bf16.msra.mxu0 0
    %1698 = vmatpush.bf16.msra.mxu0 0
    %1699 = vmatpush.bf16.msra.mxu0 0
    %1700 = vmatpush.bf16.msra.mxu0 0
    %1701 = vmatpush.bf16.msra.mxu0 0
    %1702 = vmatpush.bf16.msra.mxu0 0
    %1703 = vmatpush.bf16.msra.mxu0 %v1681
    %1704 = vmatmul.bf16.gmra.mxu0 %v1675
    %v1705 = vpop.f32.mrf.mxu0
    %v1706 = vadd.f32 0.0, %v1705
    %v1707 = vpop.f32.mrf.mxu0
    %1708 = vdwg.mxu0
    %v1709 = vadd.f32 %v1665, %v1693
    %v1710 = vadd.f32 %v1666, %v1706
    %s1711 = scalar_lea.vmem %s5, 32
    %v1712 = vld [vmem:[%s1711] sm:$0xf]
    %1713 = vrot.lane.b32.xlu0 %v1368, 106
    %v1714 = vpop.permute.xlu0 %1713
    %1715 = vrot.lane.b32.xlu0 %v1369, 106
    %v1716 = vpop.permute.xlu0 %1715
    %v1717 = vsel %vm1293, %v1714, %v1716
    %v1719 = vsel %vm1375, %v1712, 0
    %v1722 = vsel %vm1379, %v1717, 0
    %v1725 = vsel %vm1379, %v1716, 0
    %1727 = vmatpush.bf16.msra.mxu0 0
    %1728 = vmatpush.bf16.msra.mxu0 0
    %1729 = vmatpush.bf16.msra.mxu0 0
    %1730 = vmatpush.bf16.msra.mxu0 0
    %1731 = vmatpush.bf16.msra.mxu0 0
    %1732 = vmatpush.bf16.msra.mxu0 0
    %1733 = vmatpush.bf16.msra.mxu0 0
    %1734 = vmatpush.bf16.msra.mxu0 %v1722
    %1735 = vmatmul.bf16.gmra.mxu0 %v1719
    %v1736 = vpop.f32.mrf.mxu0
    %v1737 = vadd.f32 0.0, %v1736
    %v1738 = vpop.f32.mrf.mxu0
    %1739 = vdwg.mxu0
    %1740 = vmatpush.bf16.msra.mxu0 0
    %1741 = vmatpush.bf16.msra.mxu0 0
    %1742 = vmatpush.bf16.msra.mxu0 0
    %1743 = vmatpush.bf16.msra.mxu0 0
    %1744 = vmatpush.bf16.msra.mxu0 0
    %1745 = vmatpush.bf16.msra.mxu0 0
    %1746 = vmatpush.bf16.msra.mxu0 0
    %1747 = vmatpush.bf16.msra.mxu0 %v1725
    %1748 = vmatmul.bf16.gmra.mxu0 %v1719
    %v1749 = vpop.f32.mrf.mxu0
    %v1750 = vadd.f32 0.0, %v1749
    %v1751 = vpop.f32.mrf.mxu0
    %1752 = vdwg.mxu0
    %v1753 = vadd.f32 %v1709, %v1737
    %v1754 = vadd.f32 %v1710, %v1750
    %v1755 = vld [vmem:[%s6] sm:$0xff]
    %1757 = vset.pattern.permute.xlu0 0
    %1758 = vperm.xlu0 %1757, %v1755
    %v1759 = vpop.permute.xlu0 %1758
    %v1761 = vadd.f32 %v1753, %v1759
    %v1762 = vadd.f32 %v1754, %v1759
    %v1763 = vmax.f32 %v1761, 0.0
    %v1764 = vmax.f32 %v1762, 0.0
    %1765 = vst [vmem:[#allocation4] sm:$0xff] %v1763
    %vm1766 = vcmask 424960
    %1767 = vst.msk [vmem:[#allocation4 + $0x8] sm:$0xff] %vm1766, %v1764
    // Predicated region
    $region30: #{tpu_custom_call.1} parent=1 // pred_check
      _
    $region31: #{tpu_custom_call.1} parent=1 // pred_check_branch
      %1769 = sbr.rel (0) target = $region33
    $region32: #{tpu_custom_call.1} parent=1 // pred_region
      %1771 = vsyncadd [#allocation5], 0
      %s1773 = sshll.u32 [#allocation4], 4
      %s1774 = int_to_ptr.vmem [resolvable:$true] %s1773
      %s1775 = sshll.u32 %s7, 4
      %s1776 = int_to_ptr.hbm [resolvable:$true] %s1775
      %1778 = dma.vmem_to_hbm [thread:$0]  %s1774, 256, %s1776, [#allocation5]
    $region33: #{tpu_custom_call.1} parent=1 // pred_fallthru
      _
    // Predicated region
    $region34: #{tpu_custom_call.1} parent=1 // pred_check
      _
    $region35: #{tpu_custom_call.1} parent=1 // pred_check_branch
      %1780 = sbr.rel (0) target = $region37
    $region36: #{tpu_custom_call.1} parent=1 // pred_region
      %1782 = dma.done [#allocation5], 256
    $region37: #{tpu_custom_call.1} parent=1 // pred_fallthru
      _
    %1783 = vsyncpa [#allocation5], 1

</llo_original>
